<compile_context>
chip_gen: v7x
topology: tpu7x:2x2x1
jax: 0.10.0
libtpu: 0.0.40
codegen_flags: <defaults>
</compile_context>

<pallas_src>
import numpy as np

import jax
import jax.numpy as jnp
from jax import lax
from jax.experimental import pallas as pl
from jax.experimental.pallas import tpu as pltpu

BN_EPS = 1e-5


# ----------------------------------------------------------------------------
# Plain-JAX glue: the leading max_pool3d (kernel (1,3,3), stride (1,2,2)).
# TODO(synk): pooling is done with lax.reduce_window outside the Pallas kernel
# (cheap pre-processing, not the hot path).
# ----------------------------------------------------------------------------
def max_pool3d_133(x, stride=2):
    return lax.reduce_window(
        x, -jnp.inf, lax.max,
        window_dimensions=(1, 1, 1, 3, 3),
        window_strides=(1, 1, 1, stride, stride),
        padding="VALID")


# ----------------------------------------------------------------------------
# Fused Pallas kernel: attend + compare + aggregate + residual + relu.
# Each grid step processes BB batches (BB*N rows).
# ----------------------------------------------------------------------------
def make_aca_kernel(T, S, N, Cin, Ch, BB):
    f32 = jnp.float32
    bf16 = jnp.bfloat16

    def kernel(x_ref, wgv_ref, wcmp_ref, war_ref, wav_ref, wagg_ref,
               out_ref, rm_ref):
        dot = lambda a, b: jnp.dot(a, b, preferred_element_type=f32)

        xb = x_ref[...].astype(bf16)                          # (BB*N, Cin)

        # Fused query/memory + value projection (one matmul):
        #   G = x @ (attn * Wq^T Wm),   V = x @ Wv^T
        GV = dot(xb, wgv_ref[...])                            # (BB*N, Cin+Ch) f32
        G = GV[:, :Cin].astype(bf16)                          # (BB*N, Cin)
        Vb = GV[:, Cin:].astype(bf16)                         # (BB*N, Ch)

        # Aggregate accumulator; start with the V term (agg-BN folded in weight).
        Z = dot(Vb, wav_ref[...])                             # (BB*N, Cout) f32

        for t_k in range(T):                                  # static unroll (tiny T)
            lhs_blocks = []
            for b in range(BB):                               # per-batch attend
                r0 = b * N
                Gb = G[r0:r0 + N, :]
                xk = xb[r0 + t_k * S:r0 + (t_k + 1) * S, :]   # (S, Cin)
                # ---- Attend: every query pixel of batch b vs key frame t_k --
                a = lax.dot_general(Gb, xk, (((1,), (1,)), ((), ())),
                                    preferred_element_type=f32)   # (N, S)
                a = a - jnp.max(a, axis=-1, keepdims=True)
                p = jnp.exp(a)
                l = jnp.sum(p, axis=-1, keepdims=True)
                Vk = Vb[r0 + t_k * S:r0 + (t_k + 1) * S, :]   # (S, Ch) bf16
                # deferred softmax normalization (approx reciprocal -> EUP slot)
                R = dot(p.astype(bf16), Vk) * pl.reciprocal(l, approx=True)  # (N, Ch)

                # ---- R-mean over query frames (1/T folded into w_ar) --------
                rm = R[0:S, :]
                for t_q in range(1, T):
                    rm = rm + R[t_q * S:(t_q + 1) * S, :]
                rm_ref[r0 + t_k * S:r0 + (t_k + 1) * S, :] = rm

                # ---- fused compare LHS: [R | V_k(rep) | R*V_k] --------------
                Vk_rep = jnp.concatenate([Vk] * T, axis=0)    # (N, Ch) bf16
                lhs_blocks.append(jnp.concatenate(
                    [R.astype(bf16), Vk_rep, (R * Vk_rep).astype(bf16)],
                    axis=1))                                  # (N, 3*Ch)

            lhs = (lhs_blocks[0] if BB == 1
                   else jnp.concatenate(lhs_blocks, axis=0))  # (BB*N, 3*Ch)
            # Compare: cat/sub/mul in ONE matmul (compare-BN folded in weight).
            c = dot(lhs, wcmp_ref[...])                       # (BB*N, 3*Cc) f32
            # Aggregate contribution of this key frame, one matmul.
            Z = Z + dot(jnp.maximum(c, 0.0).astype(bf16), wagg_ref[t_k])

        # R-mean aggregate term (1/T and agg-BN folded into w_ar).
        Z = Z + dot(rm_ref[...].astype(bf16), war_ref[...])

        # residual + relu, one full-block store
        out_ref[...] = jnp.maximum(x_ref[...] + Z, 0.0)

    return kernel


# ----------------------------------------------------------------------------
# Host-side weight plumbing: fold every scale into the weights, fuse the convs
# into block-concatenated matmul slabs, cast bf16.
# ----------------------------------------------------------------------------
def _prep_weights(params, T):
    wq, wm, wv = params["wq"], params["wm"], params["wv"]        # (Ch, Cin)
    wcat = params["wcat"]                                        # (Cc, 2*Ch)
    wsub, wmul = params["wsub"], params["wmul"]                  # (Cc, Ch)
    wagg = params["wagg"]                                        # (Cout, 2*Ch + 3*Cc*T)
    Ch, Cin = wq.shape
    Cc = wsub.shape[0]
    Cout = wagg.shape[0]
    bn = 1.0 / np.sqrt(1.0 + BN_EPS)     # eval-mode BN: x / sqrt(var + eps)
    attn = 1.0 / np.sqrt(Ch)

    # Fused G/V projection: [attn * Wq^T Wm | Wv^T]  -> (Cin, Cin + Ch)
    w_qm = attn * (wq.T @ wm)
    w_gv = jnp.concatenate([w_qm, wv.T], axis=1)

    # Fused compare weight: LHS columns are [R | Vk | R*Vk] (each Ch wide),
    # output columns are [cat | sub | mul] (each Cc wide); compare-BN folded.
    z = jnp.zeros((Ch, Cc), dtype=wq.dtype)
    w_cmp = bn * jnp.concatenate([
        jnp.concatenate([wcat[:, :Ch].T,  wsub.T, z], axis=1),   # from R
        jnp.concatenate([wcat[:, Ch:].T, -wsub.T, z], axis=1),   # from Vk
        jnp.concatenate([z, z, wmul.T], axis=1),                 # from R*Vk
    ], axis=0)                                                   # (3*Ch, 3*Cc)

    # Aggregate conv split by input group; agg-BN (and 1/T for R-mean) folded.
    w_ar = (bn / T) * wagg[:, :Ch].T                             # (Ch, Cout)
    w_av = bn * wagg[:, Ch:2 * Ch].T                             # (Ch, Cout)
    # PyTorch channel order of wagg's compare block is (g*Cc + j)*T + t_k;
    # regroup to per-key-frame slabs whose rows match w_cmp's output columns.
    wc = wagg[:, 2 * Ch:].reshape(Cout, 3, Cc, T)                # (Cout, g, j, t_k)
    w_agg = bn * wc.transpose(3, 1, 2, 0).reshape(T, 3 * Cc, Cout)

    bf = jnp.bfloat16
    return tuple(w.astype(bf) for w in (w_gv, w_cmp, w_ar, w_av, w_agg))


def _cores_per_device():
    """Best-effort TensorCore count per JAX device (perf-only knob)."""
    try:
        kind = jax.devices()[0].device_kind.lower()
    except Exception:
        return 1
    # v5e / v6e ("lite" line) expose a single TensorCore; v4/v5p/v7x expose 2.
    if "lite" in kind or "v5e" in kind or "v6e" in kind:
        return 1
    return 2


def aca_block_pallas(x, params, num_images, batches_per_step=None):
    """x: (B, Cin, T, H, W) float32 (PyTorch NCDHW-for-3D convention)."""
    B, Cin, T, H, W = x.shape
    assert T == num_images
    Ch = Cin // 2
    Cc = Cin // (num_images * 3)
    Cout = Cin

    xp = max_pool3d_133(x, stride=2)                     # (B, Cin, T, Hp, Wp)
    Hp, Wp = xp.shape[3], xp.shape[4]
    S = Hp * Wp
    N = T * S

    # Batches per grid step: merge all batches on single-TC chips (v5e/v6e),
    # keep >=2 parallel steps on dual-TC chips (v7x).
    if batches_per_step is None:
        steps = max(1, min(B, _cores_per_device()))
        batches_per_step = max(1, B // steps)
    batches_per_step = max(1, min(B, int(batches_per_step)))
    while B % batches_per_step:
        batches_per_step -= 1
    BB = batches_per_step
    steps = B // BB

    # kernel layout: (B*N, Cin), channel-last, batch folded into rows
    x_lay = jnp.transpose(xp, (0, 2, 3, 4, 1)).reshape(B * N, Cin)

    ws = _prep_weights(params, T)
    w_gv, w_cmp, w_ar, w_av, w_agg = ws

    const2 = lambda shape: pl.BlockSpec(shape, lambda g: (0, 0))

    out_lay = pl.pallas_call(
        make_aca_kernel(T, S, N, Cin, Ch, BB),
        out_shape=jax.ShapeDtypeStruct((B * N, Cout), jnp.float32),
        grid=(steps,),
        in_specs=[
            pl.BlockSpec((BB * N, Cin), lambda g: (g, 0)),   # x
            const2((Cin, Cin + Ch)),                         # w_gv
            const2((3 * Ch, 3 * Cc)),                        # w_cmp
            const2((Ch, Cout)),                              # w_ar
            const2((Ch, Cout)),                              # w_av
            pl.BlockSpec((T, 3 * Cc, Cout), lambda g: (0, 0, 0)),   # w_agg
        ],
        out_specs=pl.BlockSpec((BB * N, Cout), lambda g: (g, 0)),
        scratch_shapes=[pltpu.VMEM((BB * N, Ch), jnp.float32)],     # R-mean acc
        compiler_params=pltpu.CompilerParams(dimension_semantics=("parallel",)),
    )(x_lay, *ws)

    # back to PyTorch layout
    return out_lay.reshape(B, T, Hp, Wp, Cout).transpose(0, 4, 1, 2, 3)


# ----------------------------------------------------------------------------
# Pure-JAX reference (literal translation of the PyTorch forward) for checking.
# ----------------------------------------------------------------------------
def aca_block_reference(x, params, num_images):
    with jax.default_matmul_precision("highest"):
        B, Cin, T, H, W = x.shape
        Ch = Cin // 2
        bn_scale = 1.0 / np.sqrt(1.0 + BN_EPS)

        xp = max_pool3d_133(x, stride=2)
        Hp, Wp = xp.shape[3], xp.shape[4]
        S = Hp * Wp
        N = T * S

        def conv1x1(inp, w):          # inp: (B, Ci, D, H, W), w: (Co, Ci)
            return jnp.einsum("oi,bidhw->bodhw", w, inp)

        # Attend
        Q = conv1x1(xp, params["wq"])
        M = conv1x1(xp, params["wm"])
        Vv = conv1x1(xp, params["wv"])
        V_i = Vv
        Qf = Q.reshape(B, Ch, N).transpose(0, 2, 1)            # (B, N, Ch)
        Mf = M.reshape(B, Ch, N)                               # (B, Ch, N)
        Vt = Vv.transpose(0, 2, 1, 3, 4).reshape(B * T, Ch, S).transpose(0, 2, 1)
        A = jnp.einsum("bqc,bck->bqk", Qf, Mf) / np.sqrt(Ch)   # (B, N, N)
        A = A.reshape(B, N, T, S).transpose(0, 2, 1, 3).reshape(B * T, N, S)
        A = jax.nn.softmax(A, axis=-1)
        R = jnp.einsum("bqs,bsc->bqc", A, Vt)
        R = R.reshape(B, T, T, Hp, Wp, Ch).transpose(0, 5, 1, 2, 3, 4)  # (B,Ch,Tk,Tq,H,W)

        # Compare
        V_exp = jnp.broadcast_to(V_i[None], (T,) + V_i.shape).transpose(1, 2, 3, 0, 4, 5)
        V_exp = V_exp.reshape(B, Ch, T * T, Hp, Wp)
        Rr = R.reshape(B, Ch, T * T, Hp, Wp)
        X_cat = jnp.concatenate([Rr, V_exp], axis=1)
        C_cat = conv1x1(X_cat, params["wcat"]) * bn_scale
        C_sub = conv1x1(Rr - V_exp, params["wsub"]) * bn_scale
        C_mul = conv1x1(Rr * V_exp, params["wmul"]) * bn_scale
        Cf = jnp.concatenate([C_cat, C_sub, C_mul], axis=1)
        Cf = Cf.reshape(B, -1, T, Hp, Wp)
        Cf = jax.nn.relu(Cf)

        # Aggregate
        R_mean = jnp.mean(R, axis=3)
        Y = jnp.concatenate([R_mean, V_i, Cf], axis=1)
        Z = conv1x1(Y, params["wagg"]) * bn_scale

        return jax.nn.relu(xp + Z)


# ----------------------------------------------------------------------------
if __name__ == "__main__":
    key = jax.random.PRNGKey(0)
    B, Cin, T, H, W = 2, 24, 2, 17, 17       # pooled spatial -> 8x8, N = 128
    num_images = T                            # T must equal args.num_images
    Ch = Cin // 2
    Cc = Cin // (num_images * 3)
    in_dim = Cin + 3 * Cc * T

    keys = jax.random.split(key, 8)
    x = jax.random.normal(keys[0], (B, Cin, T, H, W), dtype=jnp.float32)
    params = {
        "wq":   jax.random.normal(keys[1], (Ch, Cin), jnp.float32) * 0.1,
        "wm":   jax.random.normal(keys[2], (Ch, Cin), jnp.float32) * 0.1,
        "wv":   jax.random.normal(keys[3], (Ch, Cin), jnp.float32) * 0.1,
        "wcat": jax.random.normal(keys[4], (Cc, Cin), jnp.float32) * 0.1,
        "wsub": jax.random.normal(keys[5], (Cc, Ch), jnp.float32) * 0.1,
        "wmul": jax.random.normal(keys[6], (Cc, Ch), jnp.float32) * 0.1,
        "wagg": jax.random.normal(keys[7], (Cin, in_dim), jnp.float32) * 0.1,
    }

    ref = jax.block_until_ready(aca_block_reference(x, params, num_images))

    # Two-step grid (one batch per step; >=2 parallel steps for dual-TC v7x).
    out = jax.block_until_ready(
        aca_block_pallas(x, params, num_images, batches_per_step=1))
    # Fully batch-merged single grid step (recommended on single-TC v5e/v6e).
    out_m = jax.block_until_ready(
        aca_block_pallas(x, params, num_images, batches_per_step=B))

    assert out.shape == ref.shape, (out.shape, ref.shape)
    assert out_m.shape == ref.shape, (out_m.shape, ref.shape)
    for cand in (out, out_m):
        err = jnp.abs(cand - ref)
        max_err = float(jnp.max(err))
        mean_err = float(jnp.mean(err))
        # bf16 MXU operands + approx softmax reciprocal vs. an fp32 "highest"
        # precision reference: typical max-abs error at these shapes ~1e-2-3e-2.
        assert max_err < 1e-1, f"max abs err {max_err}"
        assert mean_err < 2e-2, f"mean abs err {mean_err}"
    print("KERNEL_OK")
</pallas_src>

<mosaic_0001>
module attributes {stable_mosaic.version = 11 : i64} {
  func.func @kernel(%arg0: i32, %arg1: memref<128x24xf32, #tpu.memory_space<vmem>>, %arg2: memref<24x36xbf16, #tpu.memory_space<vmem>>, %arg3: memref<36x12xbf16, #tpu.memory_space<vmem>>, %arg4: memref<12x24xbf16, #tpu.memory_space<vmem>>, %arg5: memref<12x24xbf16, #tpu.memory_space<vmem>>, %arg6: memref<2x12x24xbf16, #tpu.memory_space<vmem>>, %arg7: memref<128x24xf32, #tpu.memory_space<vmem>>, %arg8: memref<128x12xf32, #tpu.memory_space<vmem>>) attributes {dimension_semantics = [#tpu.dimension_semantics<parallel>], iteration_bounds = array<i64: 2>, scalar_prefetch = 0 : i64, scratch_operands = 1 : i64, tpu.core_type = #tpu.core_type<tc>, window_params = [{transform_indices = @transform_0, window_bounds = array<i64: 128, 24>}, {pipeline_mode = #tpu.pipeline_mode<synchronous>, transform_indices = @transform_1, window_bounds = array<i64: 24, 36>}, {pipeline_mode = #tpu.pipeline_mode<synchronous>, transform_indices = @transform_2, window_bounds = array<i64: 36, 12>}, {pipeline_mode = #tpu.pipeline_mode<synchronous>, transform_indices = @transform_3, window_bounds = array<i64: 12, 24>}, {pipeline_mode = #tpu.pipeline_mode<synchronous>, transform_indices = @transform_4, window_bounds = array<i64: 12, 24>}, {pipeline_mode = #tpu.pipeline_mode<synchronous>, transform_indices = @transform_5, window_bounds = array<i64: 2, 12, 24>}, {transform_indices = @transform_6, window_bounds = array<i64: 128, 24>}]} {
    %c0 = arith.constant 0 : index
    %c0_0 = arith.constant 0 : index
    %0 = vector.load %arg1[%c0, %c0_0] : memref<128x24xf32, #tpu.memory_space<vmem>>, vector<128x24xf32>
    %1 = arith.truncf %0 : vector<128x24xf32> to vector<128x24xbf16>
    %c0_1 = arith.constant 0 : index
    %c0_2 = arith.constant 0 : index
    %2 = vector.load %arg2[%c0_1, %c0_2] : memref<24x36xbf16, #tpu.memory_space<vmem>>, vector<24x36xbf16>
    %cst = arith.constant dense<0.000000e+00> : vector<128x36xf32>
    %3 = tpu.matmul %1, %2, %cst {dimension_numbers = #tpu.dot_dimension_numbers<[1], [0], [0], [1], [0, 0, 1, 1], [], []>} : vector<128x24xbf16>, vector<24x36xbf16>, vector<128x36xf32> -> vector<128x36xf32>
    %4 = vector.extract_strided_slice %3 {offsets = [0, 0], sizes = [128, 24], strides = [1, 1]} : vector<128x36xf32> to vector<128x24xf32>
    %5 = arith.truncf %4 : vector<128x24xf32> to vector<128x24xbf16>
    %6 = vector.extract_strided_slice %3 {offsets = [0, 24], sizes = [128, 12], strides = [1, 1]} : vector<128x36xf32> to vector<128x12xf32>
    %7 = arith.truncf %6 : vector<128x12xf32> to vector<128x12xbf16>
    %c0_3 = arith.constant 0 : index
    %c0_4 = arith.constant 0 : index
    %8 = vector.load %arg5[%c0_3, %c0_4] : memref<12x24xbf16, #tpu.memory_space<vmem>>, vector<12x24xbf16>
    %cst_5 = arith.constant dense<0.000000e+00> : vector<128x24xf32>
    %9 = tpu.matmul %7, %8, %cst_5 {dimension_numbers = #tpu.dot_dimension_numbers<[1], [0], [0], [1], [0, 0, 1, 1], [], []>} : vector<128x12xbf16>, vector<12x24xbf16>, vector<128x24xf32> -> vector<128x24xf32>
    %10 = vector.extract_strided_slice %1 {offsets = [0, 0], sizes = [64, 24], strides = [1, 1]} : vector<128x24xbf16> to vector<64x24xbf16>
    %cst_6 = arith.constant dense<0.000000e+00> : vector<128x64xf32>
    %11 = tpu.matmul %5, %10, %cst_6 {dimension_numbers = #tpu.dot_dimension_numbers<[1], [1], [0], [0], [0, 0, 1, 0], [], []>} : vector<128x24xbf16>, vector<64x24xbf16>, vector<128x64xf32> -> vector<128x64xf32>
    %cst_7 = arith.constant dense<0xFF800000> : vector<128xf32>
    %12 = vector.multi_reduction <maximumf>, %11, %cst_7 [1] : vector<128x64xf32> to vector<128xf32>
    %13 = vector.shape_cast %12 : vector<128xf32> to vector<128x1xf32>
    %14 = vector.broadcast %13 : vector<128x1xf32> to vector<128x64xf32>
    %15 = arith.subf %11, %14 : vector<128x64xf32>
    %16 = math.exp %15 : vector<128x64xf32>
    %cst_8 = arith.constant dense<0.000000e+00> : vector<128xf32>
    %17 = vector.multi_reduction <add>, %16, %cst_8 [1] : vector<128x64xf32> to vector<128xf32>
    %18 = vector.shape_cast %17 : vector<128xf32> to vector<128x1xf32>
    %19 = vector.extract_strided_slice %7 {offsets = [0, 0], sizes = [64, 12], strides = [1, 1]} : vector<128x12xbf16> to vector<64x12xbf16>
    %20 = arith.truncf %16 : vector<128x64xf32> to vector<128x64xbf16>
    %cst_9 = arith.constant dense<0.000000e+00> : vector<128x12xf32>
    %21 = tpu.matmul %20, %19, %cst_9 {dimension_numbers = #tpu.dot_dimension_numbers<[1], [0], [0], [1], [0, 0, 1, 1], [], []>} : vector<128x64xbf16>, vector<64x12xbf16>, vector<128x12xf32> -> vector<128x12xf32>
    %22 = tpu.reciprocal %18 {approx = true} : vector<128x1xf32> -> vector<128x1xf32>
    %23 = vector.broadcast %22 : vector<128x1xf32> to vector<128x12xf32>
    %24 = arith.mulf %21, %23 : vector<128x12xf32>
    %25 = vector.extract_strided_slice %24 {offsets = [0, 0], sizes = [64, 12], strides = [1, 1]} : vector<128x12xf32> to vector<64x12xf32>
    %26 = vector.extract_strided_slice %24 {offsets = [64, 0], sizes = [64, 12], strides = [1, 1]} : vector<128x12xf32> to vector<64x12xf32>
    %27 = arith.addf %25, %26 : vector<64x12xf32>
    %c0_10 = arith.constant 0 : index
    %c0_11 = arith.constant 0 : index
    %28 = vector.load %arg8[%c0_10, %c0_11] : memref<128x12xf32, #tpu.memory_space<vmem>>, vector<64x12xf32>
    tpu.vector_store %arg8[%c0_10, %c0_11], %27 {strides = array<i32>} : memref<128x12xf32, #tpu.memory_space<vmem>>, vector<64x12xf32>,
    %29 = tpu.concatenate %19, %19 in 0 : vector<64x12xbf16>, vector<64x12xbf16> -> vector<128x12xbf16>
    %30 = arith.truncf %24 : vector<128x12xf32> to vector<128x12xbf16>
    %31 = arith.extf %29 : vector<128x12xbf16> to vector<128x12xf32>
    %32 = arith.mulf %24, %31 : vector<128x12xf32>
    %33 = arith.truncf %32 : vector<128x12xf32> to vector<128x12xbf16>
    %34 = tpu.concatenate %30, %29, %33 in 1 : vector<128x12xbf16>, vector<128x12xbf16>, vector<128x12xbf16> -> vector<128x36xbf16>
    %c0_12 = arith.constant 0 : index
    %c0_13 = arith.constant 0 : index
    %35 = vector.load %arg3[%c0_12, %c0_13] : memref<36x12xbf16, #tpu.memory_space<vmem>>, vector<36x12xbf16>
    %cst_14 = arith.constant dense<0.000000e+00> : vector<128x12xf32>
    %36 = tpu.matmul %34, %35, %cst_14 {dimension_numbers = #tpu.dot_dimension_numbers<[1], [0], [0], [1], [0, 0, 1, 1], [], []>} : vector<128x36xbf16>, vector<36x12xbf16>, vector<128x12xf32> -> vector<128x12xf32>
    %cst_15 = arith.constant 0.000000e+00 : f32
    %37 = vector.broadcast %cst_15 : f32 to vector<128x12xf32>
    %38 = arith.maximumf %36, %37 : vector<128x12xf32>
    %39 = arith.truncf %38 : vector<128x12xf32> to vector<128x12xbf16>
    %c0_16 = arith.constant 0 : index
    %c0_17 = arith.constant 0 : index
    %c0_18 = arith.constant 0 : index
    %40 = vector.load %arg6[%c0_16, %c0_17, %c0_18] : memref<2x12x24xbf16, #tpu.memory_space<vmem>>, vector<1x12x24xbf16>
    %41 = vector.shape_cast %40 : vector<1x12x24xbf16> to vector<12x24xbf16>
    %cst_19 = arith.constant dense<0.000000e+00> : vector<128x24xf32>
    %42 = tpu.matmul %39, %41, %cst_19 {dimension_numbers = #tpu.dot_dimension_numbers<[1], [0], [0], [1], [0, 0, 1, 1], [], []>} : vector<128x12xbf16>, vector<12x24xbf16>, vector<128x24xf32> -> vector<128x24xf32>
    %43 = arith.addf %9, %42 : vector<128x24xf32>
    %44 = vector.extract_strided_slice %1 {offsets = [64, 0], sizes = [64, 24], strides = [1, 1]} : vector<128x24xbf16> to vector<64x24xbf16>
    %cst_20 = arith.constant dense<0.000000e+00> : vector<128x64xf32>
    %45 = tpu.matmul %5, %44, %cst_20 {dimension_numbers = #tpu.dot_dimension_numbers<[1], [1], [0], [0], [0, 0, 1, 0], [], []>} : vector<128x24xbf16>, vector<64x24xbf16>, vector<128x64xf32> -> vector<128x64xf32>
    %cst_21 = arith.constant dense<0xFF800000> : vector<128xf32>
    %46 = vector.multi_reduction <maximumf>, %45, %cst_21 [1] : vector<128x64xf32> to vector<128xf32>
    %47 = vector.shape_cast %46 : vector<128xf32> to vector<128x1xf32>
    %48 = vector.broadcast %47 : vector<128x1xf32> to vector<128x64xf32>
    %49 = arith.subf %45, %48 : vector<128x64xf32>
    %50 = math.exp %49 : vector<128x64xf32>
    %cst_22 = arith.constant dense<0.000000e+00> : vector<128xf32>
    %51 = vector.multi_reduction <add>, %50, %cst_22 [1] : vector<128x64xf32> to vector<128xf32>
    %52 = vector.shape_cast %51 : vector<128xf32> to vector<128x1xf32>
    %53 = vector.extract_strided_slice %7 {offsets = [64, 0], sizes = [64, 12], strides = [1, 1]} : vector<128x12xbf16> to vector<64x12xbf16>
    %54 = arith.truncf %50 : vector<128x64xf32> to vector<128x64xbf16>
    %cst_23 = arith.constant dense<0.000000e+00> : vector<128x12xf32>
    %55 = tpu.matmul %54, %53, %cst_23 {dimension_numbers = #tpu.dot_dimension_numbers<[1], [0], [0], [1], [0, 0, 1, 1], [], []>} : vector<128x64xbf16>, vector<64x12xbf16>, vector<128x12xf32> -> vector<128x12xf32>
    %56 = tpu.reciprocal %52 {approx = true} : vector<128x1xf32> -> vector<128x1xf32>
    %57 = vector.broadcast %56 : vector<128x1xf32> to vector<128x12xf32>
    %58 = arith.mulf %55, %57 : vector<128x12xf32>
    %59 = vector.extract_strided_slice %58 {offsets = [0, 0], sizes = [64, 12], strides = [1, 1]} : vector<128x12xf32> to vector<64x12xf32>
    %60 = vector.extract_strided_slice %58 {offsets = [64, 0], sizes = [64, 12], strides = [1, 1]} : vector<128x12xf32> to vector<64x12xf32>
    %61 = arith.addf %59, %60 : vector<64x12xf32>
    %c64 = arith.constant 64 : index
    %c0_24 = arith.constant 0 : index
    %62 = vector.load %arg8[%c64, %c0_24] : memref<128x12xf32, #tpu.memory_space<vmem>>, vector<64x12xf32>
    tpu.vector_store %arg8[%c64, %c0_24], %61 {strides = array<i32>} : memref<128x12xf32, #tpu.memory_space<vmem>>, vector<64x12xf32>,
    %63 = tpu.concatenate %53, %53 in 0 : vector<64x12xbf16>, vector<64x12xbf16> -> vector<128x12xbf16>
    %64 = arith.truncf %58 : vector<128x12xf32> to vector<128x12xbf16>
    %65 = arith.extf %63 : vector<128x12xbf16> to vector<128x12xf32>
    %66 = arith.mulf %58, %65 : vector<128x12xf32>
    %67 = arith.truncf %66 : vector<128x12xf32> to vector<128x12xbf16>
    %68 = tpu.concatenate %64, %63, %67 in 1 : vector<128x12xbf16>, vector<128x12xbf16>, vector<128x12xbf16> -> vector<128x36xbf16>
    %c0_25 = arith.constant 0 : index
    %c0_26 = arith.constant 0 : index
    %69 = vector.load %arg3[%c0_25, %c0_26] : memref<36x12xbf16, #tpu.memory_space<vmem>>, vector<36x12xbf16>
    %cst_27 = arith.constant dense<0.000000e+00> : vector<128x12xf32>
    %70 = tpu.matmul %68, %69, %cst_27 {dimension_numbers = #tpu.dot_dimension_numbers<[1], [0], [0], [1], [0, 0, 1, 1], [], []>} : vector<128x36xbf16>, vector<36x12xbf16>, vector<128x12xf32> -> vector<128x12xf32>
    %cst_28 = arith.constant 0.000000e+00 : f32
    %71 = vector.broadcast %cst_28 : f32 to vector<128x12xf32>
    %72 = arith.maximumf %70, %71 : vector<128x12xf32>
    %73 = arith.truncf %72 : vector<128x12xf32> to vector<128x12xbf16>
    %c1 = arith.constant 1 : index
    %c0_29 = arith.constant 0 : index
    %c0_30 = arith.constant 0 : index
    %74 = vector.load %arg6[%c1, %c0_29, %c0_30] : memref<2x12x24xbf16, #tpu.memory_space<vmem>>, vector<1x12x24xbf16>
    %75 = vector.shape_cast %74 : vector<1x12x24xbf16> to vector<12x24xbf16>
    %cst_31 = arith.constant dense<0.000000e+00> : vector<128x24xf32>
    %76 = tpu.matmul %73, %75, %cst_31 {dimension_numbers = #tpu.dot_dimension_numbers<[1], [0], [0], [1], [0, 0, 1, 1], [], []>} : vector<128x12xbf16>, vector<12x24xbf16>, vector<128x24xf32> -> vector<128x24xf32>
    %77 = arith.addf %43, %76 : vector<128x24xf32>
    %c0_32 = arith.constant 0 : index
    %c0_33 = arith.constant 0 : index
    %78 = vector.load %arg8[%c0_32, %c0_33] : memref<128x12xf32, #tpu.memory_space<vmem>>, vector<128x12xf32>
    %79 = arith.truncf %78 : vector<128x12xf32> to vector<128x12xbf16>
    %c0_34 = arith.constant 0 : index
    %c0_35 = arith.constant 0 : index
    %80 = vector.load %arg4[%c0_34, %c0_35] : memref<12x24xbf16, #tpu.memory_space<vmem>>, vector<12x24xbf16>
    %cst_36 = arith.constant dense<0.000000e+00> : vector<128x24xf32>
    %81 = tpu.matmul %79, %80, %cst_36 {dimension_numbers = #tpu.dot_dimension_numbers<[1], [0], [0], [1], [0, 0, 1, 1], [], []>} : vector<128x12xbf16>, vector<12x24xbf16>, vector<128x24xf32> -> vector<128x24xf32>
    %82 = arith.addf %77, %81 : vector<128x24xf32>
    %c0_37 = arith.constant 0 : index
    %c0_38 = arith.constant 0 : index
    %83 = vector.load %arg1[%c0_37, %c0_38] : memref<128x24xf32, #tpu.memory_space<vmem>>, vector<128x24xf32>
    %84 = arith.addf %83, %82 : vector<128x24xf32>
    %cst_39 = arith.constant 0.000000e+00 : f32
    %85 = vector.broadcast %cst_39 : f32 to vector<128x24xf32>
    %86 = arith.maximumf %84, %85 : vector<128x24xf32>
    %c0_40 = arith.constant 0 : index
    %c0_41 = arith.constant 0 : index
    %87 = vector.load %arg7[%c0_40, %c0_41] : memref<128x24xf32, #tpu.memory_space<vmem>>, vector<128x24xf32>
    tpu.vector_store %arg7[%c0_40, %c0_41], %86 {strides = array<i32>} : memref<128x24xf32, #tpu.memory_space<vmem>>, vector<128x24xf32>,
    return
  }
  func.func @transform_0(%arg0: i32) -> (i32, i32) {
    %c0_i32 = arith.constant 0 : i32
    %c0_i32_0 = arith.constant 0 : i32
    return %arg0, %c0_i32 : i32, i32
  }
  func.func @transform_1(%arg0: i32) -> (i32, i32) {
    %c0_i32 = arith.constant 0 : i32
    %c0_i32_0 = arith.constant 0 : i32
    %c0_i32_1 = arith.constant 0 : i32
    return %c0_i32, %c0_i32_0 : i32, i32
  }
  func.func @transform_2(%arg0: i32) -> (i32, i32) {
    %c0_i32 = arith.constant 0 : i32
    %c0_i32_0 = arith.constant 0 : i32
    %c0_i32_1 = arith.constant 0 : i32
    return %c0_i32, %c0_i32_0 : i32, i32
  }
  func.func @transform_3(%arg0: i32) -> (i32, i32) {
    %c0_i32 = arith.constant 0 : i32
    %c0_i32_0 = arith.constant 0 : i32
    %c0_i32_1 = arith.constant 0 : i32
    return %c0_i32, %c0_i32_0 : i32, i32
  }
  func.func @transform_4(%arg0: i32) -> (i32, i32) {
    %c0_i32 = arith.constant 0 : i32
    %c0_i32_0 = arith.constant 0 : i32
    %c0_i32_1 = arith.constant 0 : i32
    return %c0_i32, %c0_i32_0 : i32, i32
  }
  func.func @transform_5(%arg0: i32) -> (i32, i32, i32) {
    %c0_i32 = arith.constant 0 : i32
    %c0_i32_0 = arith.constant 0 : i32
    %c0_i32_1 = arith.constant 0 : i32
    %c0_i32_2 = arith.constant 0 : i32
    return %c0_i32, %c0_i32_0, %c0_i32_1 : i32, i32, i32
  }
  func.func @transform_6(%arg0: i32) -> (i32, i32) {
    %c0_i32 = arith.constant 0 : i32
    %c0_i32_0 = arith.constant 0 : i32
    return %arg0, %c0_i32 : i32, i32
  }
}

</mosaic_0001>

<llo_original>
// kernel: tpu_custom_call.1
$region0: #{tpu_custom_call.1}
  #allocation0 [shape = 'u32[]', space=smem, size = 0x4, offset = 0x4, fixed_abs, tag = 'smem constant byte address 0x4 - core index']
  #allocation1 [shape = 'u32[144,128]{1,0:T(1,128)}', space=vmem, size = 0x12000, scoped, tag = 'internal scratch']
  #allocation2 [shape = 'f32[128,12]{1,0:T(8,128)}', space=vmem, size = 0x10000, scoped, tag = 'scratch operand']
  %s0 = inlined_call_operand.vmem [shape: f32[256,24], index: 0, kind: input, shape index: {}]
  %s1 = inlined_call_operand.vmem [shape: bf16[24,36], index: 1, kind: input, shape index: {}]
  %s2 = inlined_call_operand.vmem [shape: bf16[36,12], index: 2, kind: input, shape index: {}]
  %s3 = inlined_call_operand.vmem [shape: bf16[12,24], index: 3, kind: input, shape index: {}]
  %s4 = inlined_call_operand.vmem [shape: bf16[12,24], index: 4, kind: input, shape index: {}]
  %s5 = inlined_call_operand.vmem [shape: bf16[2,12,24], index: 5, kind: input, shape index: {}]
  %s6 = inlined_call_operand.vmem [shape: f32[256,24], index: 6, kind: output, shape index: {}]
  %s7 = sld [smem:[#allocation0]]
  $region57: #{tpu_custom_call.1} parent=0
    _
  %s9 = ssub.s32 1, %s7
  %s10 = scalar_select 0, %s9, %s7
  loop: start=0, step=1, limit=4
  $region2: #{tpu_custom_call.1} parent=0 // loop_pre_header
    _
  $region3: #{tpu_custom_call.1} parent=0 // loop_header
    %s12 = sphi 0, %s16
    %p13 = scmp.ge.s32.totalorder %s12, 4
    %s22 = sphi 0, %s24
    %s25 = sphi 0, %s22
    %s26 = sphi 0, %s25
    %s42 = sphi 0, %s26
    %s46 = sphi 0, %s46
    %s48 = sphi 0, %s46
    %s49 = sphi 0, %s48
    %s63 = sphi 0, %s49
    %s67 = sphi 0, %s67
    %s69 = sphi 0, %s67
    %s70 = sphi 0, %s69
    %s84 = sphi 0, %s70
    %s88 = sphi 0, %s88
    %s90 = sphi 0, %s88
    %s91 = sphi 0, %s90
    %s105 = sphi 0, %s91
    %s109 = sphi 0, %s109
    %s111 = sphi 0, %s109
    %s112 = sphi 0, %s111
    %s126 = sphi 0, %s112
    %s130 = sphi 0, %s130
    %s132 = sphi 0, %s130
    %s133 = sphi 0, %s132
    %s147 = sphi 0, %s133
    %s153 = sphi 0, %s155
    %s156 = sphi 0, %s153
    %s157 = sphi 0, %s156
    %s173 = sphi 0, %s157
  $region4: #{tpu_custom_call.1} parent=0 // loop_header_branch
    %15 = sbr.rel (%p13) target = $region8
  $region5: #{tpu_custom_call.1} parent=0 // loop_body
    %s17 = ssub.s32 %s12, 1
    %s18 = ssub.s32 %s12, 2
    %s19 = sadd.s32 %s12, 1
    %s20 = ssub.s32 %s12, %s19
    %p21 = scmp.eq.s32.totalorder %s20, 0
    %s23 = sadd.s32 %s22, 1
    %s24 = scalar_select %p21, %s22, %s23
    %p27 = pneg %p21
    %p28 = scmp.eq.s32.totalorder %s12, 1
    %p29 = por %p27, %p28
    %p30 = scmp.ne.s32.totalorder %s22, %s25
    %p31 = scmp.eq.s32.totalorder %s12, 0
    %p32 = por %p30, %p31
    %p33 = scmp.ne.s32.totalorder %s22, %s25
    %p34 = scmp.eq.s32.totalorder %s17, 1
    %p35 = por %p33, %p34
    %p36 = scmp.ne.s32.totalorder %s25, %s26
    %p37 = scmp.eq.s32.totalorder %s17, 0
    %p38 = por %p36, %p37
    %p39 = scmp.ne.s32.totalorder %s25, %s26
    %p40 = scmp.eq.s32.totalorder %s18, 1
    %p41 = por %p39, %p40
    %p43 = scmp.ne.s32.totalorder %s26, %s42
    %p44 = scmp.eq.s32.totalorder %s18, 0
    %p45 = por %p43, %p44
    %s47 = sadd.s32 %s46, 1
    %p50 = scmp.eq.s32.totalorder %s12, 1
    %p51 = scmp.ne.s32.totalorder %s46, %s48
    %p52 = scmp.eq.s32.totalorder %s12, 0
    %p53 = por %p51, %p52
    %p54 = scmp.ne.s32.totalorder %s46, %s48
    %p55 = scmp.eq.s32.totalorder %s17, 1
    %p56 = por %p54, %p55
    %p57 = scmp.ne.s32.totalorder %s48, %s49
    %p58 = scmp.eq.s32.totalorder %s17, 0
    %p59 = por %p57, %p58
    %p60 = scmp.ne.s32.totalorder %s48, %s49
    %p61 = scmp.eq.s32.totalorder %s18, 1
    %p62 = por %p60, %p61
    %p64 = scmp.ne.s32.totalorder %s49, %s63
    %p65 = scmp.eq.s32.totalorder %s18, 0
    %p66 = por %p64, %p65
    %s68 = sadd.s32 %s67, 1
    %p71 = scmp.eq.s32.totalorder %s12, 1
    %p72 = scmp.ne.s32.totalorder %s67, %s69
    %p73 = scmp.eq.s32.totalorder %s12, 0
    %p74 = por %p72, %p73
    %p75 = scmp.ne.s32.totalorder %s67, %s69
    %p76 = scmp.eq.s32.totalorder %s17, 1
    %p77 = por %p75, %p76
    %p78 = scmp.ne.s32.totalorder %s69, %s70
    %p79 = scmp.eq.s32.totalorder %s17, 0
    %p80 = por %p78, %p79
    %p81 = scmp.ne.s32.totalorder %s69, %s70
    %p82 = scmp.eq.s32.totalorder %s18, 1
    %p83 = por %p81, %p82
    %p85 = scmp.ne.s32.totalorder %s70, %s84
    %p86 = scmp.eq.s32.totalorder %s18, 0
    %p87 = por %p85, %p86
    %s89 = sadd.s32 %s88, 1
    %p92 = scmp.eq.s32.totalorder %s12, 1
    %p93 = scmp.ne.s32.totalorder %s88, %s90
    %p94 = scmp.eq.s32.totalorder %s12, 0
    %p95 = por %p93, %p94
    %p96 = scmp.ne.s32.totalorder %s88, %s90
    %p97 = scmp.eq.s32.totalorder %s17, 1
    %p98 = por %p96, %p97
    %p99 = scmp.ne.s32.totalorder %s90, %s91
    %p100 = scmp.eq.s32.totalorder %s17, 0
    %p101 = por %p99, %p100
    %p102 = scmp.ne.s32.totalorder %s90, %s91
    %p103 = scmp.eq.s32.totalorder %s18, 1
    %p104 = por %p102, %p103
    %p106 = scmp.ne.s32.totalorder %s91, %s105
    %p107 = scmp.eq.s32.totalorder %s18, 0
    %p108 = por %p106, %p107
    %s110 = sadd.s32 %s109, 1
    %p113 = scmp.eq.s32.totalorder %s12, 1
    %p114 = scmp.ne.s32.totalorder %s109, %s111
    %p115 = scmp.eq.s32.totalorder %s12, 0
    %p116 = por %p114, %p115
    %p117 = scmp.ne.s32.totalorder %s109, %s111
    %p118 = scmp.eq.s32.totalorder %s17, 1
    %p119 = por %p117, %p118
    %p120 = scmp.ne.s32.totalorder %s111, %s112
    %p121 = scmp.eq.s32.totalorder %s17, 0
    %p122 = por %p120, %p121
    %p123 = scmp.ne.s32.totalorder %s111, %s112
    %p124 = scmp.eq.s32.totalorder %s18, 1
    %p125 = por %p123, %p124
    %p127 = scmp.ne.s32.totalorder %s112, %s126
    %p128 = scmp.eq.s32.totalorder %s18, 0
    %p129 = por %p127, %p128
    %s131 = sadd.s32 %s130, 1
    %p134 = scmp.eq.s32.totalorder %s12, 1
    %p135 = scmp.ne.s32.totalorder %s130, %s132
    %p136 = scmp.eq.s32.totalorder %s12, 0
    %p137 = por %p135, %p136
    %p138 = scmp.ne.s32.totalorder %s130, %s132
    %p139 = scmp.eq.s32.totalorder %s17, 1
    %p140 = por %p138, %p139
    %p141 = scmp.ne.s32.totalorder %s132, %s133
    %p142 = scmp.eq.s32.totalorder %s17, 0
    %p143 = por %p141, %p142
    %p144 = scmp.ne.s32.totalorder %s132, %s133
    %p145 = scmp.eq.s32.totalorder %s18, 1
    %p146 = por %p144, %p145
    %p148 = scmp.ne.s32.totalorder %s133, %s147
    %p149 = scmp.eq.s32.totalorder %s18, 0
    %p150 = por %p148, %p149
    %s151 = ssub.s32 %s12, %s19
    %p152 = scmp.eq.s32.totalorder %s151, 0
    %s154 = sadd.s32 %s153, 1
    %s155 = scalar_select %p152, %s153, %s154
    %p158 = pneg %p152
    %p159 = scmp.eq.s32.totalorder %s12, 1
    %p160 = por %p158, %p159
    %p161 = scmp.ne.s32.totalorder %s153, %s156
    %p162 = scmp.eq.s32.totalorder %s12, 0
    %p163 = por %p161, %p162
    %p164 = scmp.ne.s32.totalorder %s153, %s156
    %p165 = scmp.eq.s32.totalorder %s17, 1
    %p166 = por %p164, %p165
    %p167 = scmp.ne.s32.totalorder %s156, %s157
    %p168 = scmp.eq.s32.totalorder %s17, 0
    %p169 = por %p167, %p168
    %p170 = scmp.ne.s32.totalorder %s156, %s157
    %p171 = scmp.eq.s32.totalorder %s18, 1
    %p172 = por %p170, %p171
    %p174 = scmp.ne.s32.totalorder %s157, %s173
    %p175 = scmp.eq.s32.totalorder %s18, 0
    %p176 = por %p174, %p175
    %p177 = scmp.le.s32.totalorder 1, %s12
    %p178 = scmp.lt.s32.totalorder %s12, 3
    %p179 = pnand %p177, %p178
    %p180 = pneg %p179
    // Predicated region
    $region9: #{tpu_custom_call.1} parent=5 // pred_check
      _
    $region10: #{tpu_custom_call.1} parent=5 // pred_check_branch
      %182 = sbr.rel (%p179) target = $region12
    $region11: #{tpu_custom_call.1} parent=5 // pred_region
      %s183 = ssub.s32 %s12, 1
      // Predicated region
      $region13: #{tpu_custom_call.1} parent=11 // pred_check
        %p184 = pneg %p59
      $region14: #{tpu_custom_call.1} parent=11 // pred_check_branch
        %186 = sbr.rel (%p184) target = $region16
      $region15: #{tpu_custom_call.1} parent=11 // pred_region
        _
      $region16: #{tpu_custom_call.1} parent=11 // pred_fallthru
        _
      // Predicated region
      $region17: #{tpu_custom_call.1} parent=11 // pred_check
        %p187 = pneg %p80
      $region18: #{tpu_custom_call.1} parent=11 // pred_check_branch
        %189 = sbr.rel (%p187) target = $region20
      $region19: #{tpu_custom_call.1} parent=11 // pred_region
        _
      $region20: #{tpu_custom_call.1} parent=11 // pred_fallthru
        _
      // Predicated region
      $region21: #{tpu_custom_call.1} parent=11 // pred_check
        %p190 = pneg %p101
      $region22: #{tpu_custom_call.1} parent=11 // pred_check_branch
        %192 = sbr.rel (%p190) target = $region24
      $region23: #{tpu_custom_call.1} parent=11 // pred_region
        _
      $region24: #{tpu_custom_call.1} parent=11 // pred_fallthru
        _
      // Predicated region
      $region25: #{tpu_custom_call.1} parent=11 // pred_check
        %p193 = pneg %p122
      $region26: #{tpu_custom_call.1} parent=11 // pred_check_branch
        %195 = sbr.rel (%p193) target = $region28
      $region27: #{tpu_custom_call.1} parent=11 // pred_region
        _
      $region28: #{tpu_custom_call.1} parent=11 // pred_fallthru
        _
      // Predicated region
      $region29: #{tpu_custom_call.1} parent=11 // pred_check
        %p196 = pneg %p143
      $region30: #{tpu_custom_call.1} parent=11 // pred_check_branch
        %198 = sbr.rel (%p196) target = $region32
      $region31: #{tpu_custom_call.1} parent=11 // pred_region
        _
      $region32: #{tpu_custom_call.1} parent=11 // pred_fallthru
        _
    $region12: #{tpu_custom_call.1} parent=5 // pred_fallthru
      _
    %p199 = scmp.lt.s32.totalorder %s12, 2
    // Predicated region
    $region33: #{tpu_custom_call.1} parent=5 // pred_check
      %p200 = pneg %p199
    $region34: #{tpu_custom_call.1} parent=5 // pred_check_branch
      %202 = sbr.rel (%p200) target = $region36
    $region35: #{tpu_custom_call.1} parent=5 // pred_region
      // Predicated region
      $region37: #{tpu_custom_call.1} parent=35 // pred_check
        %p203 = pneg %p32
      $region38: #{tpu_custom_call.1} parent=35 // pred_check_branch
        %205 = sbr.rel (%p203) target = $region40
      $region39: #{tpu_custom_call.1} parent=35 // pred_region
        %s206 = smul.u32 16, %s12
        %p207 = scmp.lt.s32.totalorder %s206, 31
        %s208 = scalar_select %p207, %s206, 31
        %s209 = smul.addr %s208, 8
        %s210 = scalar_lea.vmem %s0, %s209
        %s211 = smul.u32 16, %s12
      $region40: #{tpu_custom_call.1} parent=35 // pred_fallthru
        _
    $region36: #{tpu_custom_call.1} parent=5 // pred_fallthru
      _
    %p212 = scmp.le.s32.totalorder 1, %s12
    %p213 = scmp.lt.s32.totalorder %s12, 3
    %p214 = pnand %p212, %p213
    %p215 = pneg %p214
    // Predicated region
    $region41: #{tpu_custom_call.1} parent=5 // pred_check
      _
    $region42: #{tpu_custom_call.1} parent=5 // pred_check_branch
      %217 = sbr.rel (%p214) target = $region44
    $region43: #{tpu_custom_call.1} parent=5 // pred_region
      %s218 = ssub.s32 %s12, 1
      %s219 = smul.u32 16, %s17
      %p220 = scmp.lt.s32.totalorder %s219, 31
      %s221 = scalar_select %p220, %s219, 31
      %s222 = smul.addr %s221, 8
      %s223 = scalar_lea.vmem %s0, %s222
      %p224 = pneg %p38
      %p225 = pneg %p35
      %p226 = pneg %p59
      %p227 = pneg %p56
      %p228 = pneg %p80
      %p229 = pneg %p77
      %p230 = pneg %p101
      %p231 = pneg %p98
      %p232 = pneg %p122
      %p233 = pneg %p119
      %p234 = pneg %p143
      %p235 = pneg %p140
      %p236 = pneg %p169
      %p237 = pneg %p166
      %s238 = smul.u32 16, %s17
      %p239 = scmp.lt.s32.totalorder %s238, 31
      %s240 = scalar_select %p239, %s238, 31
      %s241 = smul.addr %s240, 8
      %s242 = scalar_lea.vmem %s6, %s241
      %s243 = smul.u32 16, %s17
      %p244 = scmp.lt.s32.totalorder %s243, 31
      %s245 = scalar_select %p244, %s243, 31
      %s246 = smul.addr %s245, 8
      %s247 = scalar_lea.vmem %s0, %s246
      %s248 = smul.u32 16, %s17
      %s249 = smul.u32 16, %s17
      %p250 = scmp.lt.s32.totalorder %s249, 31
      %s251 = scalar_select %p250, %s249, 31
      %s252 = smul.addr %s251, 8
      %s253 = scalar_lea.vmem %s6, %s252
      %s254 = smul.u32 16, %s17
      %v256 = vld [vmem:[%s247] sm:$0xff]
      %v257 = vld [vmem:[%s247 + $0x8] sm:$0xff]
      %v258 = vld [vmem:[%s247 + $0x10] sm:$0xff]
      %v259 = vld [vmem:[%s247 + $0x18] sm:$0xff]
      %v260 = vld [vmem:[%s247 + $0x20] sm:$0xff]
      %v261 = vld [vmem:[%s247 + $0x28] sm:$0xff]
      %v262 = vld [vmem:[%s247 + $0x30] sm:$0xff]
      %v263 = vld [vmem:[%s247 + $0x38] sm:$0xff]
      %v264 = vld [vmem:[%s247 + $0x40] sm:$0xff]
      %v265 = vld [vmem:[%s247 + $0x48] sm:$0xff]
      %v266 = vld [vmem:[%s247 + $0x50] sm:$0xff]
      %v267 = vld [vmem:[%s247 + $0x58] sm:$0xff]
      %v268 = vld [vmem:[%s247 + $0x60] sm:$0xff]
      %v269 = vld [vmem:[%s247 + $0x68] sm:$0xff]
      %v270 = vld [vmem:[%s247 + $0x70] sm:$0xff]
      %v271 = vld [vmem:[%s247 + $0x78] sm:$0xff]
      %v272 = vpack.c.bf16 %v257, %v256
      %v273 = vpack.c.bf16 %v259, %v258
      %v274 = vpack.c.bf16 %v261, %v260
      %v275 = vpack.c.bf16 %v263, %v262
      %v276 = vpack.c.bf16 %v265, %v264
      %v277 = vpack.c.bf16 %v267, %v266
      %v278 = vpack.c.bf16 %v269, %v268
      %v279 = vpack.c.bf16 %v271, %v270
      %v280 = vld [vmem:[%s1] sm:$0xf]
      %v281 = vld [vmem:[%s1 + $0x4] sm:$0xf]
      %v282 = vld [vmem:[%s1 + $0x8] sm:$0xf]
      %v286 = vunpack.c.l.b16 %v280
      %v287 = vunpack.c.l.b16 %v281
      %v288 = vunpack.c.l.b16 %v282
      %v289 = vpack.c.b16 %v287, %v286
      %v290 = vpack.c.b16 %v288, %v288
      %vm292 = vcmask 195584
      %v294 = vsel %vm292, %v272, 0
      %v297 = vsel %vm292, %v273, 0
      %v300 = vsel %vm292, %v274, 0
      %v303 = vsel %vm292, %v275, 0
      %v306 = vsel %vm292, %v276, 0
      %v309 = vsel %vm292, %v277, 0
      %v312 = vsel %vm292, %v278, 0
      %v315 = vsel %vm292, %v279, 0
      %vm317 = vcmask 1043456
      %v319 = vsel %vm317, %v290, 0
      %321 = vmatprep.subr.bf16.mxu0 0
      %322 = vmatpush1.bf16.msra.mxu0 %v289
      %323 = vmatprep.subr.bf16.mxu0 0
      %324 = vmatpush1.bf16.msra.mxu0 %v319
      %325 = vmatprep.subr.bf16.mxu0 0
      %326 = vmatpush1.bf16.msra.mxu0 0
      %327 = vmatprep.subr.bf16.mxu0 0
      %328 = vmatpush1.bf16.msra.mxu0 0
      %329 = vmatprep.subr.bf16.mxu0 0
      %330 = vmatpush1.bf16.msra.mxu0 0
      %331 = vmatprep.subr.bf16.mxu0 0
      %332 = vmatpush1.bf16.msra.mxu0 0
      %333 = vmatprep.subr.bf16.mxu0 0
      %334 = vmatpush1.bf16.msra.mxu0 0
      %335 = vmatprep.subr.bf16.mxu0 0
      %336 = vmatpush1.bf16.msra.mxu0 0
      %337 = vmatprep.subr.bf16.mxu0 0
      %338 = vmatpush1.bf16.msra.mxu0 0
      %339 = vmatprep.subr.bf16.mxu0 0
      %340 = vmatpush1.bf16.msra.mxu0 0
      %341 = vmatprep.subr.bf16.mxu0 0
      %342 = vmatpush1.bf16.msra.mxu0 0
      %343 = vmatprep.subr.bf16.mxu0 0
      %344 = vmatpush1.bf16.msra.mxu0 0
      %345 = vmatprep.subr.bf16.mxu0 0
      %346 = vmatpush1.bf16.msra.mxu0 0
      %347 = vmatprep.subr.bf16.mxu0 0
      %348 = vmatpush1.bf16.msra.mxu0 0
      %349 = vmatprep.subr.bf16.mxu0 0
      %350 = vmatpush1.bf16.msra.mxu0 0
      %351 = vmatprep.subr.bf16.mxu0 0
      %352 = vmatpush1.bf16.msra.mxu0 0
      %353 = vmatprep.mubr.bf16.mxu0 0
      %354 = vmatmul.mubr.bf16.gmra.mrb[0].mxu0 %v294
      %v355 = vpop.f32.mrb[0].mxu0
      %v356 = vadd.f32 0.0, %v355
      %v357 = vpop.f32.mrb[0].mxu0
      %v358 = vpop.f32.mrb[0].mxu0
      %v359 = vadd.f32 0.0, %v358
      %v360 = vpop.f32.mrb[0].mxu0
      %361 = vmatprep.mubr.bf16.mxu0 0
      %362 = vmatmul.mubr.bf16.gmra.mrb[0].mxu0 %v297
      %v363 = vpop.f32.mrb[0].mxu0
      %v364 = vadd.f32 0.0, %v363
      %v365 = vpop.f32.mrb[0].mxu0
      %v366 = vpop.f32.mrb[0].mxu0
      %v367 = vadd.f32 0.0, %v366
      %v368 = vpop.f32.mrb[0].mxu0
      %369 = vmatprep.mubr.bf16.mxu0 0
      %370 = vmatmul.mubr.bf16.gmra.mrb[0].mxu0 %v300
      %v371 = vpop.f32.mrb[0].mxu0
      %v372 = vadd.f32 0.0, %v371
      %v373 = vpop.f32.mrb[0].mxu0
      %v374 = vpop.f32.mrb[0].mxu0
      %v375 = vadd.f32 0.0, %v374
      %v376 = vpop.f32.mrb[0].mxu0
      %377 = vmatprep.mubr.bf16.mxu0 0
      %378 = vmatmul.mubr.bf16.gmra.mrb[0].mxu0 %v303
      %v379 = vpop.f32.mrb[0].mxu0
      %v380 = vadd.f32 0.0, %v379
      %v381 = vpop.f32.mrb[0].mxu0
      %v382 = vpop.f32.mrb[0].mxu0
      %v383 = vadd.f32 0.0, %v382
      %v384 = vpop.f32.mrb[0].mxu0
      %385 = vmatprep.mubr.bf16.mxu0 0
      %386 = vmatmul.mubr.bf16.gmra.mrb[0].mxu0 %v306
      %v387 = vpop.f32.mrb[0].mxu0
      %v388 = vadd.f32 0.0, %v387
      %v389 = vpop.f32.mrb[0].mxu0
      %v390 = vpop.f32.mrb[0].mxu0
      %v391 = vadd.f32 0.0, %v390
      %v392 = vpop.f32.mrb[0].mxu0
      %393 = vmatprep.mubr.bf16.mxu0 0
      %394 = vmatmul.mubr.bf16.gmra.mrb[0].mxu0 %v309
      %v395 = vpop.f32.mrb[0].mxu0
      %v396 = vadd.f32 0.0, %v395
      %v397 = vpop.f32.mrb[0].mxu0
      %v398 = vpop.f32.mrb[0].mxu0
      %v399 = vadd.f32 0.0, %v398
      %v400 = vpop.f32.mrb[0].mxu0
      %401 = vmatprep.mubr.bf16.mxu0 0
      %402 = vmatmul.mubr.bf16.gmra.mrb[0].mxu0 %v312
      %v403 = vpop.f32.mrb[0].mxu0
      %v404 = vadd.f32 0.0, %v403
      %v405 = vpop.f32.mrb[0].mxu0
      %v406 = vpop.f32.mrb[0].mxu0
      %v407 = vadd.f32 0.0, %v406
      %v408 = vpop.f32.mrb[0].mxu0
      %409 = vmatprep.mubr.bf16.mxu0 0
      %410 = vmatmul.mubr.bf16.gmra.mrb[0].mxu0 %v315
      %v411 = vpop.f32.mrb[0].mxu0
      %v412 = vadd.f32 0.0, %v411
      %v413 = vpop.f32.mrb[0].mxu0
      %v414 = vpop.f32.mrb[0].mxu0
      %v415 = vadd.f32 0.0, %v414
      %v416 = vpop.f32.mrb[0].mxu0
      %417 = vdwg.mxu0
      %v418 = vpack.c.bf16 %v359, %v356
      %v419 = vpack.c.bf16 %v367, %v364
      %v420 = vpack.c.bf16 %v375, %v372
      %v421 = vpack.c.bf16 %v383, %v380
      %v422 = vpack.c.bf16 %v391, %v388
      %v423 = vpack.c.bf16 %v399, %v396
      %v424 = vpack.c.bf16 %v407, %v404
      %v425 = vpack.c.bf16 %v415, %v412
      %v426 = vld [vmem:[%s4] sm:$0xf]
      %v427 = vld [vmem:[%s4 + $0x4] sm:$0x3]
      %v429 = vsel %vm292, %v418, 0
      %v432 = vsel %vm292, %v419, 0
      %v435 = vsel %vm292, %v420, 0
      %v438 = vsel %vm292, %v421, 0
      %v441 = vsel %vm292, %v422, 0
      %v444 = vsel %vm292, %v423, 0
      %v447 = vsel %vm292, %v424, 0
      %v450 = vsel %vm292, %v425, 0
      %452 = vmatprep.subr.bf16.mxu0 0
      %453 = vmatpush1.bf16.xpose.msra.mxu0 %v294
      %454 = vmatprep.subr.bf16.mxu0 0
      %455 = vmatpush1.bf16.xpose.msra.mxu0 %v297
      %456 = vmatprep.subr.bf16.mxu0 0
      %457 = vmatpush1.bf16.xpose.msra.mxu0 %v300
      %458 = vmatprep.subr.bf16.mxu0 0
      %459 = vmatpush1.bf16.xpose.msra.mxu0 %v303
      %460 = vmatprep.subr.bf16.mxu0 0
      %461 = vmatpush1.bf16.xpose.msra.mxu0 0
      %462 = vmatprep.subr.bf16.mxu0 0
      %463 = vmatpush1.bf16.xpose.msra.mxu0 0
      %464 = vmatprep.subr.bf16.mxu0 0
      %465 = vmatpush1.bf16.xpose.msra.mxu0 0
      %466 = vmatprep.subr.bf16.mxu0 0
      %467 = vmatpush1.bf16.xpose.msra.mxu0 0
      %468 = vmatprep.subr.bf16.mxu0 0
      %469 = vmatpush1.bf16.xpose.msra.mxu0 0
      %470 = vmatprep.subr.bf16.mxu0 0
      %471 = vmatpush1.bf16.xpose.msra.mxu0 0
      %472 = vmatprep.subr.bf16.mxu0 0
      %473 = vmatpush1.bf16.xpose.msra.mxu0 0
      %474 = vmatprep.subr.bf16.mxu0 0
      %475 = vmatpush1.bf16.xpose.msra.mxu0 0
      %476 = vmatprep.subr.bf16.mxu0 0
      %477 = vmatpush1.bf16.xpose.msra.mxu0 0
      %478 = vmatprep.subr.bf16.mxu0 0
      %479 = vmatpush1.bf16.xpose.msra.mxu0 0
      %480 = vmatprep.subr.bf16.mxu0 0
      %481 = vmatpush1.bf16.xpose.msra.mxu0 0
      %482 = vmatprep.subr.bf16.mxu0 0
      %483 = vmatpush1.bf16.xpose.msra.mxu0 0
      %484 = vmatprep.mubr.bf16.mxu0 0
      %485 = vmatmul.mubr.bf16.gmra.mrb[0].mxu0 %v429
      %v486 = vpop.f32.mrb[0].mxu0
      %v487 = vadd.f32 0.0, %v486
      %v488 = vpop.f32.mrb[0].mxu0
      %v489 = vpop.f32.mrb[0].mxu0
      %v490 = vadd.f32 0.0, %v489
      %v491 = vpop.f32.mrb[0].mxu0
      %492 = vmatprep.mubr.bf16.mxu0 0
      %493 = vmatmul.mubr.bf16.gmra.mrb[0].mxu0 %v432
      %v494 = vpop.f32.mrb[0].mxu0
      %v495 = vadd.f32 0.0, %v494
      %v496 = vpop.f32.mrb[0].mxu0
      %v497 = vpop.f32.mrb[0].mxu0
      %v498 = vadd.f32 0.0, %v497
      %v499 = vpop.f32.mrb[0].mxu0
      %500 = vmatprep.mubr.bf16.mxu0 0
      %501 = vmatmul.mubr.bf16.gmra.mrb[0].mxu0 %v435
      %v502 = vpop.f32.mrb[0].mxu0
      %v503 = vadd.f32 0.0, %v502
      %v504 = vpop.f32.mrb[0].mxu0
      %v505 = vpop.f32.mrb[0].mxu0
      %v506 = vadd.f32 0.0, %v505
      %v507 = vpop.f32.mrb[0].mxu0
      %508 = vmatprep.mubr.bf16.mxu0 0
      %509 = vmatmul.mubr.bf16.gmra.mrb[0].mxu0 %v438
      %v510 = vpop.f32.mrb[0].mxu0
      %v511 = vadd.f32 0.0, %v510
      %v512 = vpop.f32.mrb[0].mxu0
      %v513 = vpop.f32.mrb[0].mxu0
      %v514 = vadd.f32 0.0, %v513
      %v515 = vpop.f32.mrb[0].mxu0
      %516 = vmatprep.mubr.bf16.mxu0 0
      %517 = vmatmul.mubr.bf16.gmra.mrb[0].mxu0 %v441
      %v518 = vpop.f32.mrb[0].mxu0
      %v519 = vadd.f32 0.0, %v518
      %v520 = vpop.f32.mrb[0].mxu0
      %v521 = vpop.f32.mrb[0].mxu0
      %v522 = vadd.f32 0.0, %v521
      %v523 = vpop.f32.mrb[0].mxu0
      %524 = vmatprep.mubr.bf16.mxu0 0
      %525 = vmatmul.mubr.bf16.gmra.mrb[0].mxu0 %v444
      %v526 = vpop.f32.mrb[0].mxu0
      %v527 = vadd.f32 0.0, %v526
      %v528 = vpop.f32.mrb[0].mxu0
      %v529 = vpop.f32.mrb[0].mxu0
      %v530 = vadd.f32 0.0, %v529
      %v531 = vpop.f32.mrb[0].mxu0
      %532 = vmatprep.mubr.bf16.mxu0 0
      %533 = vmatmul.mubr.bf16.gmra.mrb[0].mxu0 %v447
      %v534 = vpop.f32.mrb[0].mxu0
      %v535 = vadd.f32 0.0, %v534
      %v536 = vpop.f32.mrb[0].mxu0
      %v537 = vpop.f32.mrb[0].mxu0
      %v538 = vadd.f32 0.0, %v537
      %v539 = vpop.f32.mrb[0].mxu0
      %540 = vmatprep.mubr.bf16.mxu0 0
      %541 = vmatmul.mubr.bf16.gmra.mrb[0].mxu0 %v450
      %v542 = vpop.f32.mrb[0].mxu0
      %v543 = vadd.f32 0.0, %v542
      %v544 = vpop.f32.mrb[0].mxu0
      %v545 = vpop.f32.mrb[0].mxu0
      %v546 = vadd.f32 0.0, %v545
      %v547 = vpop.f32.mrb[0].mxu0
      %548 = vdwg.mxu0
      %vm549 = vcmask 523264
      %v550 = vsel %vm549, %v487, -inf
      %551 = vmax.xlane.f32.xlu0 %v550
      %v552 = vpop.xlane.xlu0 %551
      %v553 = vsel %vm549, %v490, -inf
      %554 = vmax.xlane.f32.xlu0 %v553
      %v555 = vpop.xlane.xlu0 %554
      %v556 = vsel %vm549, %v495, -inf
      %557 = vmax.xlane.f32.xlu0 %v556
      %v558 = vpop.xlane.xlu0 %557
      %v559 = vsel %vm549, %v498, -inf
      %560 = vmax.xlane.f32.xlu0 %v559
      %v561 = vpop.xlane.xlu0 %560
      %v562 = vsel %vm549, %v503, -inf
      %563 = vmax.xlane.f32.xlu0 %v562
      %v564 = vpop.xlane.xlu0 %563
      %v565 = vsel %vm549, %v506, -inf
      %566 = vmax.xlane.f32.xlu0 %v565
      %v567 = vpop.xlane.xlu0 %566
      %v568 = vsel %vm549, %v511, -inf
      %569 = vmax.xlane.f32.xlu0 %v568
      %v570 = vpop.xlane.xlu0 %569
      %v571 = vsel %vm549, %v514, -inf
      %572 = vmax.xlane.f32.xlu0 %v571
      %v573 = vpop.xlane.xlu0 %572
      %v574 = vsel %vm549, %v519, -inf
      %575 = vmax.xlane.f32.xlu0 %v574
      %v576 = vpop.xlane.xlu0 %575
      %v577 = vsel %vm549, %v522, -inf
      %578 = vmax.xlane.f32.xlu0 %v577
      %v579 = vpop.xlane.xlu0 %578
      %v580 = vsel %vm549, %v527, -inf
      %581 = vmax.xlane.f32.xlu0 %v580
      %v582 = vpop.xlane.xlu0 %581
      %v583 = vsel %vm549, %v530, -inf
      %584 = vmax.xlane.f32.xlu0 %v583
      %v585 = vpop.xlane.xlu0 %584
      %v586 = vsel %vm549, %v535, -inf
      %587 = vmax.xlane.f32.xlu0 %v586
      %v588 = vpop.xlane.xlu0 %587
      %v589 = vsel %vm549, %v538, -inf
      %590 = vmax.xlane.f32.xlu0 %v589
      %v591 = vpop.xlane.xlu0 %590
      %v592 = vsel %vm549, %v543, -inf
      %593 = vmax.xlane.f32.xlu0 %v592
      %v594 = vpop.xlane.xlu0 %593
      %v595 = vsel %vm549, %v546, -inf
      %596 = vmax.xlane.f32.xlu0 %v595
      %v597 = vpop.xlane.xlu0 %596
      %v598 = vsub.f32 %v487, %v552
      %v599 = vsub.f32 %v490, %v555
      %v600 = vsub.f32 %v495, %v558
      %v601 = vsub.f32 %v498, %v561
      %v602 = vsub.f32 %v503, %v564
      %v603 = vsub.f32 %v506, %v567
      %v604 = vsub.f32 %v511, %v570
      %v605 = vsub.f32 %v514, %v573
      %v606 = vsub.f32 %v519, %v576
      %v607 = vsub.f32 %v522, %v579
      %v608 = vsub.f32 %v527, %v582
      %v609 = vsub.f32 %v530, %v585
      %v610 = vsub.f32 %v535, %v588
      %v611 = vsub.f32 %v538, %v591
      %v612 = vsub.f32 %v543, %v594
      %v613 = vsub.f32 %v546, %v597
      %v614 = vmul.f32 %v598, 1.442695
      %v615 = vpow.pop %v614
      %v616 = vmul.f32 %v599, 1.442695
      %v617 = vpow.pop %v616
      %v618 = vmul.f32 %v600, 1.442695
      %v619 = vpow.pop %v618
      %v620 = vmul.f32 %v601, 1.442695
      %v621 = vpow.pop %v620
      %v622 = vmul.f32 %v602, 1.442695
      %v623 = vpow.pop %v622
      %v624 = vmul.f32 %v603, 1.442695
      %v625 = vpow.pop %v624
      %v626 = vmul.f32 %v604, 1.442695
      %v627 = vpow.pop %v626
      %v628 = vmul.f32 %v605, 1.442695
      %v629 = vpow.pop %v628
      %v630 = vmul.f32 %v606, 1.442695
      %v631 = vpow.pop %v630
      %v632 = vmul.f32 %v607, 1.442695
      %v633 = vpow.pop %v632
      %v634 = vmul.f32 %v608, 1.442695
      %v635 = vpow.pop %v634
      %v636 = vmul.f32 %v609, 1.442695
      %v637 = vpow.pop %v636
      %v638 = vmul.f32 %v610, 1.442695
      %v639 = vpow.pop %v638
      %v640 = vmul.f32 %v611, 1.442695
      %v641 = vpow.pop %v640
      %v642 = vmul.f32 %v612, 1.442695
      %v643 = vpow.pop %v642
      %v644 = vmul.f32 %v613, 1.442695
      %v645 = vpow.pop %v644
      %v646 = vsel %vm549, %v615, 0.0
      %647 = vadd.xlane.f32.xlu0 %v646
      %v648 = vpop.xlane.xlu0 %647
      %v649 = vsel %vm549, %v617, 0.0
      %650 = vadd.xlane.f32.xlu0 %v649
      %v651 = vpop.xlane.xlu0 %650
      %v652 = vsel %vm549, %v619, 0.0
      %653 = vadd.xlane.f32.xlu0 %v652
      %v654 = vpop.xlane.xlu0 %653
      %v655 = vsel %vm549, %v621, 0.0
      %656 = vadd.xlane.f32.xlu0 %v655
      %v657 = vpop.xlane.xlu0 %656
      %v658 = vsel %vm549, %v623, 0.0
      %659 = vadd.xlane.f32.xlu0 %v658
      %v660 = vpop.xlane.xlu0 %659
      %v661 = vsel %vm549, %v625, 0.0
      %662 = vadd.xlane.f32.xlu0 %v661
      %v663 = vpop.xlane.xlu0 %662
      %v664 = vsel %vm549, %v627, 0.0
      %665 = vadd.xlane.f32.xlu0 %v664
      %v666 = vpop.xlane.xlu0 %665
      %v667 = vsel %vm549, %v629, 0.0
      %668 = vadd.xlane.f32.xlu0 %v667
      %v669 = vpop.xlane.xlu0 %668
      %v670 = vsel %vm549, %v631, 0.0
      %671 = vadd.xlane.f32.xlu0 %v670
      %v672 = vpop.xlane.xlu0 %671
      %v673 = vsel %vm549, %v633, 0.0
      %674 = vadd.xlane.f32.xlu0 %v673
      %v675 = vpop.xlane.xlu0 %674
      %v676 = vsel %vm549, %v635, 0.0
      %677 = vadd.xlane.f32.xlu0 %v676
      %v678 = vpop.xlane.xlu0 %677
      %v679 = vsel %vm549, %v637, 0.0
      %680 = vadd.xlane.f32.xlu0 %v679
      %v681 = vpop.xlane.xlu0 %680
      %v682 = vsel %vm549, %v639, 0.0
      %683 = vadd.xlane.f32.xlu0 %v682
      %v684 = vpop.xlane.xlu0 %683
      %v685 = vsel %vm549, %v641, 0.0
      %686 = vadd.xlane.f32.xlu0 %v685
      %v687 = vpop.xlane.xlu0 %686
      %v688 = vsel %vm549, %v643, 0.0
      %689 = vadd.xlane.f32.xlu0 %v688
      %v690 = vpop.xlane.xlu0 %689
      %v691 = vsel %vm549, %v645, 0.0
      %692 = vadd.xlane.f32.xlu0 %v691
      %v693 = vpop.xlane.xlu0 %692
      %v694 = vpack.c.bf16 %v617, %v615
      %v695 = vpack.c.bf16 %v621, %v619
      %v696 = vpack.c.bf16 %v625, %v623
      %v697 = vpack.c.bf16 %v629, %v627
      %v698 = vpack.c.bf16 %v633, %v631
      %v699 = vpack.c.bf16 %v637, %v635
      %v700 = vpack.c.bf16 %v641, %v639
      %v701 = vpack.c.bf16 %v645, %v643
      %706 = vrot.lane.b32.xlu0 %v418, 104
      %v707 = vpop.permute.xlu0 %706
      %708 = vrot.lane.b32.xlu0 %v419, 104
      %v709 = vpop.permute.xlu0 %708
      %710 = vrot.lane.b32.xlu0 %v420, 104
      %v711 = vpop.permute.xlu0 %710
      %712 = vrot.lane.b32.xlu0 %v421, 104
      %v713 = vpop.permute.xlu0 %712
      %v719 = vsel %vm549, %v694, 0
      %v722 = vsel %vm549, %v695, 0
      %v725 = vsel %vm549, %v696, 0
      %v728 = vsel %vm549, %v697, 0
      %v731 = vsel %vm549, %v698, 0
      %v734 = vsel %vm549, %v699, 0
      %v737 = vsel %vm549, %v700, 0
      %v740 = vsel %vm549, %v701, 0
      %742 = vmatprep.subr.bf16.mxu0 0
      %743 = vmatpush1.bf16.msra.mxu0 %v707
      %744 = vmatprep.subr.bf16.mxu0 0
      %745 = vmatpush1.bf16.msra.mxu0 %v709
      %746 = vmatprep.subr.bf16.mxu0 0
      %747 = vmatpush1.bf16.msra.mxu0 %v711
      %748 = vmatprep.subr.bf16.mxu0 0
      %749 = vmatpush1.bf16.msra.mxu0 %v713
      %750 = vmatprep.subr.bf16.mxu0 0
      %751 = vmatpush1.bf16.msra.mxu0 0
      %752 = vmatprep.subr.bf16.mxu0 0
      %753 = vmatpush1.bf16.msra.mxu0 0
      %754 = vmatprep.subr.bf16.mxu0 0
      %755 = vmatpush1.bf16.msra.mxu0 0
      %756 = vmatprep.subr.bf16.mxu0 0
      %757 = vmatpush1.bf16.msra.mxu0 0
      %758 = vmatprep.subr.bf16.mxu0 0
      %759 = vmatpush1.bf16.msra.mxu0 0
      %760 = vmatprep.subr.bf16.mxu0 0
      %761 = vmatpush1.bf16.msra.mxu0 0
      %762 = vmatprep.subr.bf16.mxu0 0
      %763 = vmatpush1.bf16.msra.mxu0 0
      %764 = vmatprep.subr.bf16.mxu0 0
      %765 = vmatpush1.bf16.msra.mxu0 0
      %766 = vmatprep.subr.bf16.mxu0 0
      %767 = vmatpush1.bf16.msra.mxu0 0
      %768 = vmatprep.subr.bf16.mxu0 0
      %769 = vmatpush1.bf16.msra.mxu0 0
      %770 = vmatprep.subr.bf16.mxu0 0
      %771 = vmatpush1.bf16.msra.mxu0 0
      %772 = vmatprep.subr.bf16.mxu0 0
      %773 = vmatpush1.bf16.msra.mxu0 0
      %774 = vmatprep.mubr.bf16.mxu0 0
      %775 = vmatmul.mubr.bf16.gmra.mrb[0].mxu0 %v719
      %v776 = vpop.f32.mrb[0].mxu0
      %v777 = vadd.f32 0.0, %v776
      %v778 = vpop.f32.mrb[0].mxu0
      %v779 = vpop.f32.mrb[0].mxu0
      %v780 = vadd.f32 0.0, %v779
      %v781 = vpop.f32.mrb[0].mxu0
      %782 = vmatprep.mubr.bf16.mxu0 0
      %783 = vmatmul.mubr.bf16.gmra.mrb[0].mxu0 %v722
      %v784 = vpop.f32.mrb[0].mxu0
      %v785 = vadd.f32 0.0, %v784
      %v786 = vpop.f32.mrb[0].mxu0
      %v787 = vpop.f32.mrb[0].mxu0
      %v788 = vadd.f32 0.0, %v787
      %v789 = vpop.f32.mrb[0].mxu0
      %790 = vmatprep.mubr.bf16.mxu0 0
      %791 = vmatmul.mubr.bf16.gmra.mrb[0].mxu0 %v725
      %v792 = vpop.f32.mrb[0].mxu0
      %v793 = vadd.f32 0.0, %v792
      %v794 = vpop.f32.mrb[0].mxu0
      %v795 = vpop.f32.mrb[0].mxu0
      %v796 = vadd.f32 0.0, %v795
      %v797 = vpop.f32.mrb[0].mxu0
      %798 = vmatprep.mubr.bf16.mxu0 0
      %799 = vmatmul.mubr.bf16.gmra.mrb[0].mxu0 %v728
      %v800 = vpop.f32.mrb[0].mxu0
      %v801 = vadd.f32 0.0, %v800
      %v802 = vpop.f32.mrb[0].mxu0
      %v803 = vpop.f32.mrb[0].mxu0
      %v804 = vadd.f32 0.0, %v803
      %v805 = vpop.f32.mrb[0].mxu0
      %806 = vmatprep.mubr.bf16.mxu0 0
      %807 = vmatmul.mubr.bf16.gmra.mrb[0].mxu0 %v731
      %v808 = vpop.f32.mrb[0].mxu0
      %v809 = vadd.f32 0.0, %v808
      %v810 = vpop.f32.mrb[0].mxu0
      %v811 = vpop.f32.mrb[0].mxu0
      %v812 = vadd.f32 0.0, %v811
      %v813 = vpop.f32.mrb[0].mxu0
      %814 = vmatprep.mubr.bf16.mxu0 0
      %815 = vmatmul.mubr.bf16.gmra.mrb[0].mxu0 %v734
      %v816 = vpop.f32.mrb[0].mxu0
      %v817 = vadd.f32 0.0, %v816
      %v818 = vpop.f32.mrb[0].mxu0
      %v819 = vpop.f32.mrb[0].mxu0
      %v820 = vadd.f32 0.0, %v819
      %v821 = vpop.f32.mrb[0].mxu0
      %822 = vmatprep.mubr.bf16.mxu0 0
      %823 = vmatmul.mubr.bf16.gmra.mrb[0].mxu0 %v737
      %v824 = vpop.f32.mrb[0].mxu0
      %v825 = vadd.f32 0.0, %v824
      %v826 = vpop.f32.mrb[0].mxu0
      %v827 = vpop.f32.mrb[0].mxu0
      %v828 = vadd.f32 0.0, %v827
      %v829 = vpop.f32.mrb[0].mxu0
      %830 = vmatprep.mubr.bf16.mxu0 0
      %831 = vmatmul.mubr.bf16.gmra.mrb[0].mxu0 %v740
      %v832 = vpop.f32.mrb[0].mxu0
      %v833 = vadd.f32 0.0, %v832
      %v834 = vpop.f32.mrb[0].mxu0
      %v835 = vpop.f32.mrb[0].mxu0
      %v836 = vadd.f32 0.0, %v835
      %v837 = vpop.f32.mrb[0].mxu0
      %838 = vdwg.mxu0
      %v839 = vrcp.pop %v648
      %v840 = vrcp.pop %v651
      %v841 = vrcp.pop %v654
      %v842 = vrcp.pop %v657
      %v843 = vrcp.pop %v660
      %v844 = vrcp.pop %v663
      %v845 = vrcp.pop %v666
      %v846 = vrcp.pop %v669
      %v847 = vrcp.pop %v672
      %v848 = vrcp.pop %v675
      %v849 = vrcp.pop %v678
      %v850 = vrcp.pop %v681
      %v851 = vrcp.pop %v684
      %v852 = vrcp.pop %v687
      %v853 = vrcp.pop %v690
      %v854 = vrcp.pop %v693
      %v855 = vmul.f32 %v777, %v839
      %v856 = vmul.f32 %v780, %v840
      %v857 = vmul.f32 %v785, %v841
      %v858 = vmul.f32 %v788, %v842
      %v859 = vmul.f32 %v793, %v843
      %v860 = vmul.f32 %v796, %v844
      %v861 = vmul.f32 %v801, %v845
      %v862 = vmul.f32 %v804, %v846
      %v863 = vmul.f32 %v809, %v847
      %v864 = vmul.f32 %v812, %v848
      %v865 = vmul.f32 %v817, %v849
      %v866 = vmul.f32 %v820, %v850
      %v867 = vmul.f32 %v825, %v851
      %v868 = vmul.f32 %v828, %v852
      %v869 = vmul.f32 %v833, %v853
      %v870 = vmul.f32 %v836, %v854
      %v871 = vadd.f32 %v855, %v863
      %v872 = vadd.f32 %v856, %v864
      %v873 = vadd.f32 %v857, %v865
      %v874 = vadd.f32 %v858, %v866
      %v875 = vadd.f32 %v859, %v867
      %v876 = vadd.f32 %v860, %v868
      %v877 = vadd.f32 %v861, %v869
      %v878 = vadd.f32 %v862, %v870
      %vm879 = vcmask 97280
      %880 = vst.msk [vmem:[#allocation2] sm:$0xff] %vm879, %v871
      %881 = vst.msk [vmem:[#allocation2 + $0x8] sm:$0xff] %vm879, %v872
      %882 = vst.msk [vmem:[#allocation2 + $0x10] sm:$0xff] %vm879, %v873
      %883 = vst.msk [vmem:[#allocation2 + $0x18] sm:$0xff] %vm879, %v874
      %884 = vst.msk [vmem:[#allocation2 + $0x20] sm:$0xff] %vm879, %v875
      %885 = vst.msk [vmem:[#allocation2 + $0x28] sm:$0xff] %vm879, %v876
      %886 = vst.msk [vmem:[#allocation2 + $0x30] sm:$0xff] %vm879, %v877
      %887 = vst.msk [vmem:[#allocation2 + $0x38] sm:$0xff] %vm879, %v878
      %v888 = vpack.c.bf16 %v856, %v855
      %v889 = vpack.c.bf16 %v858, %v857
      %v890 = vpack.c.bf16 %v860, %v859
      %v891 = vpack.c.bf16 %v862, %v861
      %v892 = vpack.c.bf16 %v864, %v863
      %v893 = vpack.c.bf16 %v866, %v865
      %v894 = vpack.c.bf16 %v868, %v867
      %v895 = vpack.c.bf16 %v870, %v869
      %v896 = vunpack.c.l.bf16 %v418
      %v897 = vunpack.c.h.bf16 %v418
      %v898 = vunpack.c.l.bf16 %v419
      %v899 = vunpack.c.h.bf16 %v419
      %v900 = vunpack.c.l.bf16 %v420
      %v901 = vunpack.c.h.bf16 %v420
      %v902 = vunpack.c.l.bf16 %v421
      %v903 = vunpack.c.h.bf16 %v421
      %912 = vrot.lane.b32.xlu0 %v896, 104
      %v913 = vpop.permute.xlu0 %912
      %914 = vrot.lane.b32.xlu0 %v897, 104
      %v915 = vpop.permute.xlu0 %914
      %916 = vrot.lane.b32.xlu0 %v898, 104
      %v917 = vpop.permute.xlu0 %916
      %918 = vrot.lane.b32.xlu0 %v899, 104
      %v919 = vpop.permute.xlu0 %918
      %920 = vrot.lane.b32.xlu0 %v900, 104
      %v921 = vpop.permute.xlu0 %920
      %922 = vrot.lane.b32.xlu0 %v901, 104
      %v923 = vpop.permute.xlu0 %922
      %924 = vrot.lane.b32.xlu0 %v902, 104
      %v925 = vpop.permute.xlu0 %924
      %926 = vrot.lane.b32.xlu0 %v903, 104
      %v927 = vpop.permute.xlu0 %926
      %v936 = vmul.f32 %v855, %v913
      %v937 = vmul.f32 %v856, %v915
      %v938 = vmul.f32 %v857, %v917
      %v939 = vmul.f32 %v858, %v919
      %v940 = vmul.f32 %v859, %v921
      %v941 = vmul.f32 %v860, %v923
      %v942 = vmul.f32 %v861, %v925
      %v943 = vmul.f32 %v862, %v927
      %v944 = vmul.f32 %v863, %v913
      %v945 = vmul.f32 %v864, %v915
      %v946 = vmul.f32 %v865, %v917
      %v947 = vmul.f32 %v866, %v919
      %v948 = vmul.f32 %v867, %v921
      %v949 = vmul.f32 %v868, %v923
      %v950 = vmul.f32 %v869, %v925
      %v951 = vmul.f32 %v870, %v927
      %v952 = vpack.c.bf16 %v937, %v936
      %v953 = vpack.c.bf16 %v939, %v938
      %v954 = vpack.c.bf16 %v941, %v940
      %v955 = vpack.c.bf16 %v943, %v942
      %v956 = vpack.c.bf16 %v945, %v944
      %v957 = vpack.c.bf16 %v947, %v946
      %v958 = vpack.c.bf16 %v949, %v948
      %v959 = vpack.c.bf16 %v951, %v950
      %960 = vrot.lane.b32.xlu0 %v418, 116
      %v961 = vpop.permute.xlu0 %960
      %962 = vrot.lane.b32.xlu0 %v419, 116
      %v963 = vpop.permute.xlu0 %962
      %964 = vrot.lane.b32.xlu0 %v420, 116
      %v965 = vpop.permute.xlu0 %964
      %966 = vrot.lane.b32.xlu0 %v421, 116
      %v967 = vpop.permute.xlu0 %966
      %976 = vrot.lane.b32.xlu0 %v952, 24
      %v977 = vpop.permute.xlu0 %976
      %978 = vrot.lane.b32.xlu0 %v953, 24
      %v979 = vpop.permute.xlu0 %978
      %980 = vrot.lane.b32.xlu0 %v954, 24
      %v981 = vpop.permute.xlu0 %980
      %982 = vrot.lane.b32.xlu0 %v955, 24
      %v983 = vpop.permute.xlu0 %982
      %984 = vrot.lane.b32.xlu0 %v956, 24
      %v985 = vpop.permute.xlu0 %984
      %986 = vrot.lane.b32.xlu0 %v957, 24
      %v987 = vpop.permute.xlu0 %986
      %988 = vrot.lane.b32.xlu0 %v958, 24
      %v989 = vpop.permute.xlu0 %988
      %990 = vrot.lane.b32.xlu0 %v959, 24
      %v991 = vpop.permute.xlu0 %990
      %v994 = vsel %vm879, %v888, %v961
      %v997 = vsel %vm879, %v889, %v963
      %v1000 = vsel %vm879, %v890, %v965
      %v1003 = vsel %vm879, %v891, %v967
      %v1005 = vsel %vm879, %v892, %v961
      %v1007 = vsel %vm879, %v893, %v963
      %v1009 = vsel %vm879, %v894, %v965
      %v1011 = vsel %vm879, %v895, %v967
      %v1013 = vsel %vm292, %v994, %v977
      %v1015 = vsel %vm292, %v997, %v979
      %v1017 = vsel %vm292, %v1000, %v981
      %v1019 = vsel %vm292, %v1003, %v983
      %v1021 = vsel %vm292, %v1005, %v985
      %v1023 = vsel %vm292, %v1007, %v987
      %v1025 = vsel %vm292, %v1009, %v989
      %v1027 = vsel %vm292, %v1011, %v991
      %v1028 = vld [vmem:[%s2] sm:$0xf]
      %v1029 = vld [vmem:[%s2 + $0x4] sm:$0xf]
      %v1030 = vld [vmem:[%s2 + $0x8] sm:$0xf]
      %v1031 = vld [vmem:[%s2 + $0xc] sm:$0xf]
      %v1032 = vld [vmem:[%s2 + $0x10] sm:$0x3]
      %v1038 = vunpack.c.l.b16 %v1028
      %v1039 = vunpack.c.l.b16 %v1029
      %v1040 = vunpack.c.l.b16 %v1030
      %v1041 = vunpack.c.l.b16 %v1031
      %v1042 = vunpack.c.l.b16 %v1032
      %v1043 = vpack.c.b16 %v1039, %v1038
      %v1044 = vpack.c.b16 %v1041, %v1040
      %v1045 = vpack.c.b16 %v1042, %v1042
      %vm1048 = vcmask 293888
      %v1049 = vsel %vm1048, %v1013, 0
      %v1051 = vsel %vm1048, %v1015, 0
      %v1053 = vsel %vm1048, %v1017, 0
      %v1055 = vsel %vm1048, %v1019, 0
      %v1057 = vsel %vm1048, %v1021, 0
      %v1059 = vsel %vm1048, %v1023, 0
      %v1061 = vsel %vm1048, %v1025, 0
      %v1063 = vsel %vm1048, %v1027, 0
      %vm1065 = vcmask 1041408
      %v1067 = vsel %vm1065, %v1045, 0
      %1069 = vmatprep.subr.bf16.mxu0 0
      %1070 = vmatpush1.bf16.msra.mxu0 %v1043
      %1071 = vmatprep.subr.bf16.mxu0 0
      %1072 = vmatpush1.bf16.msra.mxu0 %v1044
      %1073 = vmatprep.subr.bf16.mxu0 0
      %1074 = vmatpush1.bf16.msra.mxu0 %v1067
      %1075 = vmatprep.subr.bf16.mxu0 0
      %1076 = vmatpush1.bf16.msra.mxu0 0
      %1077 = vmatprep.subr.bf16.mxu0 0
      %1078 = vmatpush1.bf16.msra.mxu0 0
      %1079 = vmatprep.subr.bf16.mxu0 0
      %1080 = vmatpush1.bf16.msra.mxu0 0
      %1081 = vmatprep.subr.bf16.mxu0 0
      %1082 = vmatpush1.bf16.msra.mxu0 0
      %1083 = vmatprep.subr.bf16.mxu0 0
      %1084 = vmatpush1.bf16.msra.mxu0 0
      %1085 = vmatprep.subr.bf16.mxu0 0
      %1086 = vmatpush1.bf16.msra.mxu0 0
      %1087 = vmatprep.subr.bf16.mxu0 0
      %1088 = vmatpush1.bf16.msra.mxu0 0
      %1089 = vmatprep.subr.bf16.mxu0 0
      %1090 = vmatpush1.bf16.msra.mxu0 0
      %1091 = vmatprep.subr.bf16.mxu0 0
      %1092 = vmatpush1.bf16.msra.mxu0 0
      %1093 = vmatprep.subr.bf16.mxu0 0
      %1094 = vmatpush1.bf16.msra.mxu0 0
      %1095 = vmatprep.subr.bf16.mxu0 0
      %1096 = vmatpush1.bf16.msra.mxu0 0
      %1097 = vmatprep.subr.bf16.mxu0 0
      %1098 = vmatpush1.bf16.msra.mxu0 0
      %1099 = vmatprep.subr.bf16.mxu0 0
      %1100 = vmatpush1.bf16.msra.mxu0 0
      %1101 = vmatprep.mubr.bf16.mxu0 0
      %1102 = vmatmul.mubr.bf16.gmra.mrb[0].mxu0 %v1049
      %v1103 = vpop.f32.mrb[0].mxu0
      %v1104 = vadd.f32 0.0, %v1103
      %v1105 = vpop.f32.mrb[0].mxu0
      %v1106 = vpop.f32.mrb[0].mxu0
      %v1107 = vadd.f32 0.0, %v1106
      %v1108 = vpop.f32.mrb[0].mxu0
      %1109 = vmatprep.mubr.bf16.mxu0 0
      %1110 = vmatmul.mubr.bf16.gmra.mrb[0].mxu0 %v1051
      %v1111 = vpop.f32.mrb[0].mxu0
      %v1112 = vadd.f32 0.0, %v1111
      %v1113 = vpop.f32.mrb[0].mxu0
      %v1114 = vpop.f32.mrb[0].mxu0
      %v1115 = vadd.f32 0.0, %v1114
      %v1116 = vpop.f32.mrb[0].mxu0
      %1117 = vmatprep.mubr.bf16.mxu0 0
      %1118 = vmatmul.mubr.bf16.gmra.mrb[0].mxu0 %v1053
      %v1119 = vpop.f32.mrb[0].mxu0
      %v1120 = vadd.f32 0.0, %v1119
      %v1121 = vpop.f32.mrb[0].mxu0
      %v1122 = vpop.f32.mrb[0].mxu0
      %v1123 = vadd.f32 0.0, %v1122
      %v1124 = vpop.f32.mrb[0].mxu0
      %1125 = vmatprep.mubr.bf16.mxu0 0
      %1126 = vmatmul.mubr.bf16.gmra.mrb[0].mxu0 %v1055
      %v1127 = vpop.f32.mrb[0].mxu0
      %v1128 = vadd.f32 0.0, %v1127
      %v1129 = vpop.f32.mrb[0].mxu0
      %v1130 = vpop.f32.mrb[0].mxu0
      %v1131 = vadd.f32 0.0, %v1130
      %v1132 = vpop.f32.mrb[0].mxu0
      %1133 = vmatprep.mubr.bf16.mxu0 0
      %1134 = vmatmul.mubr.bf16.gmra.mrb[0].mxu0 %v1057
      %v1135 = vpop.f32.mrb[0].mxu0
      %v1136 = vadd.f32 0.0, %v1135
      %v1137 = vpop.f32.mrb[0].mxu0
      %v1138 = vpop.f32.mrb[0].mxu0
      %v1139 = vadd.f32 0.0, %v1138
      %v1140 = vpop.f32.mrb[0].mxu0
      %1141 = vmatprep.mubr.bf16.mxu0 0
      %1142 = vmatmul.mubr.bf16.gmra.mrb[0].mxu0 %v1059
      %v1143 = vpop.f32.mrb[0].mxu0
      %v1144 = vadd.f32 0.0, %v1143
      %v1145 = vpop.f32.mrb[0].mxu0
      %v1146 = vpop.f32.mrb[0].mxu0
      %v1147 = vadd.f32 0.0, %v1146
      %v1148 = vpop.f32.mrb[0].mxu0
      %1149 = vmatprep.mubr.bf16.mxu0 0
      %1150 = vmatmul.mubr.bf16.gmra.mrb[0].mxu0 %v1061
      %v1151 = vpop.f32.mrb[0].mxu0
      %v1152 = vadd.f32 0.0, %v1151
      %v1153 = vpop.f32.mrb[0].mxu0
      %v1154 = vpop.f32.mrb[0].mxu0
      %v1155 = vadd.f32 0.0, %v1154
      %v1156 = vpop.f32.mrb[0].mxu0
      %1157 = vmatprep.mubr.bf16.mxu0 0
      %1158 = vmatmul.mubr.bf16.gmra.mrb[0].mxu0 %v1063
      %v1159 = vpop.f32.mrb[0].mxu0
      %v1160 = vadd.f32 0.0, %v1159
      %v1161 = vpop.f32.mrb[0].mxu0
      %v1162 = vpop.f32.mrb[0].mxu0
      %v1163 = vadd.f32 0.0, %v1162
      %v1164 = vpop.f32.mrb[0].mxu0
      %1165 = vdwg.mxu0
      %v1166 = vmax.f32 %v1104, 0.0
      %v1167 = vmax.f32 %v1107, 0.0
      %v1168 = vmax.f32 %v1112, 0.0
      %v1169 = vmax.f32 %v1115, 0.0
      %v1170 = vmax.f32 %v1120, 0.0
      %v1171 = vmax.f32 %v1123, 0.0
      %v1172 = vmax.f32 %v1128, 0.0
      %v1173 = vmax.f32 %v1131, 0.0
      %v1174 = vmax.f32 %v1136, 0.0
      %v1175 = vmax.f32 %v1139, 0.0
      %v1176 = vmax.f32 %v1144, 0.0
      %v1177 = vmax.f32 %v1147, 0.0
      %v1178 = vmax.f32 %v1152, 0.0
      %v1179 = vmax.f32 %v1155, 0.0
      %v1180 = vmax.f32 %v1160, 0.0
      %v1181 = vmax.f32 %v1163, 0.0
      %v1182 = vpack.c.bf16 %v1167, %v1166
      %v1183 = vpack.c.bf16 %v1169, %v1168
      %v1184 = vpack.c.bf16 %v1171, %v1170
      %v1185 = vpack.c.bf16 %v1173, %v1172
      %v1186 = vpack.c.bf16 %v1175, %v1174
      %v1187 = vpack.c.bf16 %v1177, %v1176
      %v1188 = vpack.c.bf16 %v1179, %v1178
      %v1189 = vpack.c.bf16 %v1181, %v1180
      %v1190 = vld [vmem:[%s5] sm:$0xf]
      %v1191 = vld [vmem:[%s5 + $0x4] sm:$0x3]
      %v1194 = vunpack.c.l.b16 %v1190
      %v1195 = vunpack.c.l.b16 %v1191
      %v1196 = vpack.c.b16 %v1195, %v1194
      %v1198 = vsel %vm879, %v1182, 0
      %v1201 = vsel %vm879, %v1183, 0
      %v1204 = vsel %vm879, %v1184, 0
      %v1207 = vsel %vm879, %v1185, 0
      %v1210 = vsel %vm879, %v1186, 0
      %v1213 = vsel %vm879, %v1187, 0
      %v1216 = vsel %vm879, %v1188, 0
      %v1219 = vsel %vm879, %v1189, 0
      %vm1221 = vcmask 1045504
      %v1223 = vsel %vm1221, %v1196, 0
      %1225 = vmatprep.subr.bf16.mxu0 0
      %1226 = vmatpush1.bf16.msra.mxu0 %v1223
      %1227 = vmatprep.subr.bf16.mxu0 0
      %1228 = vmatpush1.bf16.msra.mxu0 0
      %1229 = vmatprep.subr.bf16.mxu0 0
      %1230 = vmatpush1.bf16.msra.mxu0 0
      %1231 = vmatprep.subr.bf16.mxu0 0
      %1232 = vmatpush1.bf16.msra.mxu0 0
      %1233 = vmatprep.subr.bf16.mxu0 0
      %1234 = vmatpush1.bf16.msra.mxu0 0
      %1235 = vmatprep.subr.bf16.mxu0 0
      %1236 = vmatpush1.bf16.msra.mxu0 0
      %1237 = vmatprep.subr.bf16.mxu0 0
      %1238 = vmatpush1.bf16.msra.mxu0 0
      %1239 = vmatprep.subr.bf16.mxu0 0
      %1240 = vmatpush1.bf16.msra.mxu0 0
      %1241 = vmatprep.subr.bf16.mxu0 0
      %1242 = vmatpush1.bf16.msra.mxu0 0
      %1243 = vmatprep.subr.bf16.mxu0 0
      %1244 = vmatpush1.bf16.msra.mxu0 0
      %1245 = vmatprep.subr.bf16.mxu0 0
      %1246 = vmatpush1.bf16.msra.mxu0 0
      %1247 = vmatprep.subr.bf16.mxu0 0
      %1248 = vmatpush1.bf16.msra.mxu0 0
      %1249 = vmatprep.subr.bf16.mxu0 0
      %1250 = vmatpush1.bf16.msra.mxu0 0
      %1251 = vmatprep.subr.bf16.mxu0 0
      %1252 = vmatpush1.bf16.msra.mxu0 0
      %1253 = vmatprep.subr.bf16.mxu0 0
      %1254 = vmatpush1.bf16.msra.mxu0 0
      %1255 = vmatprep.subr.bf16.mxu0 0
      %1256 = vmatpush1.bf16.msra.mxu0 0
      %1257 = vmatprep.mubr.bf16.mxu0 0
      %1258 = vmatmul.mubr.bf16.gmra.mrb[0].mxu0 %v1198
      %v1259 = vpop.f32.mrb[0].mxu0
      %v1260 = vadd.f32 0.0, %v1259
      %v1261 = vpop.f32.mrb[0].mxu0
      %v1262 = vpop.f32.mrb[0].mxu0
      %v1263 = vadd.f32 0.0, %v1262
      %v1264 = vpop.f32.mrb[0].mxu0
      %1265 = vmatprep.mubr.bf16.mxu0 0
      %1266 = vmatmul.mubr.bf16.gmra.mrb[0].mxu0 %v1201
      %v1267 = vpop.f32.mrb[0].mxu0
      %v1268 = vadd.f32 0.0, %v1267
      %v1269 = vpop.f32.mrb[0].mxu0
      %v1270 = vpop.f32.mrb[0].mxu0
      %v1271 = vadd.f32 0.0, %v1270
      %v1272 = vpop.f32.mrb[0].mxu0
      %1273 = vmatprep.mubr.bf16.mxu0 0
      %1274 = vmatmul.mubr.bf16.gmra.mrb[0].mxu0 %v1204
      %v1275 = vpop.f32.mrb[0].mxu0
      %v1276 = vadd.f32 0.0, %v1275
      %v1277 = vpop.f32.mrb[0].mxu0
      %v1278 = vpop.f32.mrb[0].mxu0
      %v1279 = vadd.f32 0.0, %v1278
      %v1280 = vpop.f32.mrb[0].mxu0
      %1281 = vmatprep.mubr.bf16.mxu0 0
      %1282 = vmatmul.mubr.bf16.gmra.mrb[0].mxu0 %v1207
      %v1283 = vpop.f32.mrb[0].mxu0
      %v1284 = vadd.f32 0.0, %v1283
      %v1285 = vpop.f32.mrb[0].mxu0
      %v1286 = vpop.f32.mrb[0].mxu0
      %v1287 = vadd.f32 0.0, %v1286
      %v1288 = vpop.f32.mrb[0].mxu0
      %1289 = vmatprep.mubr.bf16.mxu0 0
      %1290 = vmatmul.mubr.bf16.gmra.mrb[0].mxu0 %v1210
      %v1291 = vpop.f32.mrb[0].mxu0
      %v1292 = vadd.f32 0.0, %v1291
      %v1293 = vpop.f32.mrb[0].mxu0
      %v1294 = vpop.f32.mrb[0].mxu0
      %v1295 = vadd.f32 0.0, %v1294
      %v1296 = vpop.f32.mrb[0].mxu0
      %1297 = vmatprep.mubr.bf16.mxu0 0
      %1298 = vmatmul.mubr.bf16.gmra.mrb[0].mxu0 %v1213
      %v1299 = vpop.f32.mrb[0].mxu0
      %v1300 = vadd.f32 0.0, %v1299
      %v1301 = vpop.f32.mrb[0].mxu0
      %v1302 = vpop.f32.mrb[0].mxu0
      %v1303 = vadd.f32 0.0, %v1302
      %v1304 = vpop.f32.mrb[0].mxu0
      %1305 = vmatprep.mubr.bf16.mxu0 0
      %1306 = vmatmul.mubr.bf16.gmra.mrb[0].mxu0 %v1216
      %v1307 = vpop.f32.mrb[0].mxu0
      %v1308 = vadd.f32 0.0, %v1307
      %v1309 = vpop.f32.mrb[0].mxu0
      %v1310 = vpop.f32.mrb[0].mxu0
      %v1311 = vadd.f32 0.0, %v1310
      %v1312 = vpop.f32.mrb[0].mxu0
      %1313 = vmatprep.mubr.bf16.mxu0 0
      %1314 = vmatmul.mubr.bf16.gmra.mrb[0].mxu0 %v1219
      %v1315 = vpop.f32.mrb[0].mxu0
      %v1316 = vadd.f32 0.0, %v1315
      %v1317 = vpop.f32.mrb[0].mxu0
      %v1318 = vpop.f32.mrb[0].mxu0
      %v1319 = vadd.f32 0.0, %v1318
      %v1320 = vpop.f32.mrb[0].mxu0
      %1321 = vdwg.mxu0
      %1326 = vrot.lane.b32.xlu0 %v422, 104
      %v1327 = vpop.permute.xlu0 %1326
      %1328 = vrot.lane.b32.xlu0 %v423, 104
      %v1329 = vpop.permute.xlu0 %1328
      %1330 = vrot.lane.b32.xlu0 %v424, 104
      %v1331 = vpop.permute.xlu0 %1330
      %1332 = vrot.lane.b32.xlu0 %v425, 104
      %v1333 = vpop.permute.xlu0 %1332
      %v1336 = vunpack.c.l.b16 %v426
      %v1337 = vunpack.c.l.b16 %v427
      %v1338 = vpack.c.b16 %v1337, %v1336
      %v1340 = vsel %vm879, %v707, 0
      %v1343 = vsel %vm879, %v709, 0
      %v1346 = vsel %vm879, %v711, 0
      %v1349 = vsel %vm879, %v713, 0
      %v1352 = vsel %vm879, %v1327, 0
      %v1355 = vsel %vm879, %v1329, 0
      %v1358 = vsel %vm879, %v1331, 0
      %v1361 = vsel %vm879, %v1333, 0
      %v1364 = vsel %vm1221, %v1338, 0
      %1366 = vmatprep.subr.bf16.mxu0 0
      %1367 = vmatpush1.bf16.msra.mxu0 %v1364
      %1368 = vmatprep.subr.bf16.mxu0 0
      %1369 = vmatpush1.bf16.msra.mxu0 0
      %1370 = vmatprep.subr.bf16.mxu0 0
      %1371 = vmatpush1.bf16.msra.mxu0 0
      %1372 = vmatprep.subr.bf16.mxu0 0
      %1373 = vmatpush1.bf16.msra.mxu0 0
      %1374 = vmatprep.subr.bf16.mxu0 0
      %1375 = vmatpush1.bf16.msra.mxu0 0
      %1376 = vmatprep.subr.bf16.mxu0 0
      %1377 = vmatpush1.bf16.msra.mxu0 0
      %1378 = vmatprep.subr.bf16.mxu0 0
      %1379 = vmatpush1.bf16.msra.mxu0 0
      %1380 = vmatprep.subr.bf16.mxu0 0
      %1381 = vmatpush1.bf16.msra.mxu0 0
      %1382 = vmatprep.subr.bf16.mxu0 0
      %1383 = vmatpush1.bf16.msra.mxu0 0
      %1384 = vmatprep.subr.bf16.mxu0 0
      %1385 = vmatpush1.bf16.msra.mxu0 0
      %1386 = vmatprep.subr.bf16.mxu0 0
      %1387 = vmatpush1.bf16.msra.mxu0 0
      %1388 = vmatprep.subr.bf16.mxu0 0
      %1389 = vmatpush1.bf16.msra.mxu0 0
      %1390 = vmatprep.subr.bf16.mxu0 0
      %1391 = vmatpush1.bf16.msra.mxu0 0
      %1392 = vmatprep.subr.bf16.mxu0 0
      %1393 = vmatpush1.bf16.msra.mxu0 0
      %1394 = vmatprep.subr.bf16.mxu0 0
      %1395 = vmatpush1.bf16.msra.mxu0 0
      %1396 = vmatprep.subr.bf16.mxu0 0
      %1397 = vmatpush1.bf16.msra.mxu0 0
      %1398 = vmatprep.mubr.bf16.mxu0 0
      %1399 = vmatmul.mubr.bf16.gmra.mrb[0].mxu0 %v1340
      %v1400 = vpop.f32.mrb[0].mxu0
      %v1401 = vadd.f32 %v1260, %v1400
      %v1402 = vpop.f32.mrb[0].mxu0
      %v1403 = vpop.f32.mrb[0].mxu0
      %v1404 = vadd.f32 %v1263, %v1403
      %v1405 = vpop.f32.mrb[0].mxu0
      %1406 = vmatprep.mubr.bf16.mxu0 0
      %1407 = vmatmul.mubr.bf16.gmra.mrb[0].mxu0 %v1343
      %v1408 = vpop.f32.mrb[0].mxu0
      %v1409 = vadd.f32 %v1268, %v1408
      %v1410 = vpop.f32.mrb[0].mxu0
      %v1411 = vpop.f32.mrb[0].mxu0
      %v1412 = vadd.f32 %v1271, %v1411
      %v1413 = vpop.f32.mrb[0].mxu0
      %1414 = vmatprep.mubr.bf16.mxu0 0
      %1415 = vmatmul.mubr.bf16.gmra.mrb[0].mxu0 %v1346
      %v1416 = vpop.f32.mrb[0].mxu0
      %v1417 = vadd.f32 %v1276, %v1416
      %v1418 = vpop.f32.mrb[0].mxu0
      %v1419 = vpop.f32.mrb[0].mxu0
      %v1420 = vadd.f32 %v1279, %v1419
      %v1421 = vpop.f32.mrb[0].mxu0
      %1422 = vmatprep.mubr.bf16.mxu0 0
      %1423 = vmatmul.mubr.bf16.gmra.mrb[0].mxu0 %v1349
      %v1424 = vpop.f32.mrb[0].mxu0
      %v1425 = vadd.f32 %v1284, %v1424
      %v1426 = vpop.f32.mrb[0].mxu0
      %v1427 = vpop.f32.mrb[0].mxu0
      %v1428 = vadd.f32 %v1287, %v1427
      %v1429 = vpop.f32.mrb[0].mxu0
      %1430 = vmatprep.mubr.bf16.mxu0 0
      %1431 = vmatmul.mubr.bf16.gmra.mrb[0].mxu0 %v1352
      %v1432 = vpop.f32.mrb[0].mxu0
      %v1433 = vadd.f32 %v1292, %v1432
      %v1434 = vpop.f32.mrb[0].mxu0
      %v1435 = vpop.f32.mrb[0].mxu0
      %v1436 = vadd.f32 %v1295, %v1435
      %v1437 = vpop.f32.mrb[0].mxu0
      %1438 = vmatprep.mubr.bf16.mxu0 0
      %1439 = vmatmul.mubr.bf16.gmra.mrb[0].mxu0 %v1355
      %v1440 = vpop.f32.mrb[0].mxu0
      %v1441 = vadd.f32 %v1300, %v1440
      %v1442 = vpop.f32.mrb[0].mxu0
      %v1443 = vpop.f32.mrb[0].mxu0
      %v1444 = vadd.f32 %v1303, %v1443
      %v1445 = vpop.f32.mrb[0].mxu0
      %1446 = vmatprep.mubr.bf16.mxu0 0
      %1447 = vmatmul.mubr.bf16.gmra.mrb[0].mxu0 %v1358
      %v1448 = vpop.f32.mrb[0].mxu0
      %v1449 = vadd.f32 %v1308, %v1448
      %v1450 = vpop.f32.mrb[0].mxu0
      %v1451 = vpop.f32.mrb[0].mxu0
      %v1452 = vadd.f32 %v1311, %v1451
      %v1453 = vpop.f32.mrb[0].mxu0
      %1454 = vmatprep.mubr.bf16.mxu0 0
      %1455 = vmatmul.mubr.bf16.gmra.mrb[0].mxu0 %v1361
      %v1456 = vpop.f32.mrb[0].mxu0
      %v1457 = vadd.f32 %v1316, %v1456
      %v1458 = vpop.f32.mrb[0].mxu0
      %v1459 = vpop.f32.mrb[0].mxu0
      %v1460 = vadd.f32 %v1319, %v1459
      %v1461 = vpop.f32.mrb[0].mxu0
      %1462 = vdwg.mxu0
      %1463 = vmatprep.subr.bf16.mxu0 0
      %1464 = vmatpush1.bf16.xpose.msra.mxu0 %v306
      %1465 = vmatprep.subr.bf16.mxu0 0
      %1466 = vmatpush1.bf16.xpose.msra.mxu0 %v309
      %1467 = vmatprep.subr.bf16.mxu0 0
      %1468 = vmatpush1.bf16.xpose.msra.mxu0 %v312
      %1469 = vmatprep.subr.bf16.mxu0 0
      %1470 = vmatpush1.bf16.xpose.msra.mxu0 %v315
      %1471 = vmatprep.subr.bf16.mxu0 0
      %1472 = vmatpush1.bf16.xpose.msra.mxu0 0
      %1473 = vmatprep.subr.bf16.mxu0 0
      %1474 = vmatpush1.bf16.xpose.msra.mxu0 0
      %1475 = vmatprep.subr.bf16.mxu0 0
      %1476 = vmatpush1.bf16.xpose.msra.mxu0 0
      %1477 = vmatprep.subr.bf16.mxu0 0
      %1478 = vmatpush1.bf16.xpose.msra.mxu0 0
      %1479 = vmatprep.subr.bf16.mxu0 0
      %1480 = vmatpush1.bf16.xpose.msra.mxu0 0
      %1481 = vmatprep.subr.bf16.mxu0 0
      %1482 = vmatpush1.bf16.xpose.msra.mxu0 0
      %1483 = vmatprep.subr.bf16.mxu0 0
      %1484 = vmatpush1.bf16.xpose.msra.mxu0 0
      %1485 = vmatprep.subr.bf16.mxu0 0
      %1486 = vmatpush1.bf16.xpose.msra.mxu0 0
      %1487 = vmatprep.subr.bf16.mxu0 0
      %1488 = vmatpush1.bf16.xpose.msra.mxu0 0
      %1489 = vmatprep.subr.bf16.mxu0 0
      %1490 = vmatpush1.bf16.xpose.msra.mxu0 0
      %1491 = vmatprep.subr.bf16.mxu0 0
      %1492 = vmatpush1.bf16.xpose.msra.mxu0 0
      %1493 = vmatprep.subr.bf16.mxu0 0
      %1494 = vmatpush1.bf16.xpose.msra.mxu0 0
      %1495 = vmatprep.mubr.bf16.mxu0 0
      %1496 = vmatmul.mubr.bf16.gmra.mrb[0].mxu0 %v429
      %v1497 = vpop.f32.mrb[0].mxu0
      %v1498 = vadd.f32 0.0, %v1497
      %v1499 = vpop.f32.mrb[0].mxu0
      %v1500 = vpop.f32.mrb[0].mxu0
      %v1501 = vadd.f32 0.0, %v1500
      %v1502 = vpop.f32.mrb[0].mxu0
      %1503 = vmatprep.mubr.bf16.mxu0 0
      %1504 = vmatmul.mubr.bf16.gmra.mrb[0].mxu0 %v432
      %v1505 = vpop.f32.mrb[0].mxu0
      %v1506 = vadd.f32 0.0, %v1505
      %v1507 = vpop.f32.mrb[0].mxu0
      %v1508 = vpop.f32.mrb[0].mxu0
      %v1509 = vadd.f32 0.0, %v1508
      %v1510 = vpop.f32.mrb[0].mxu0
      %1511 = vmatprep.mubr.bf16.mxu0 0
      %1512 = vmatmul.mubr.bf16.gmra.mrb[0].mxu0 %v435
      %v1513 = vpop.f32.mrb[0].mxu0
      %v1514 = vadd.f32 0.0, %v1513
      %v1515 = vpop.f32.mrb[0].mxu0
      %v1516 = vpop.f32.mrb[0].mxu0
      %v1517 = vadd.f32 0.0, %v1516
      %v1518 = vpop.f32.mrb[0].mxu0
      %1519 = vmatprep.mubr.bf16.mxu0 0
      %1520 = vmatmul.mubr.bf16.gmra.mrb[0].mxu0 %v438
      %v1521 = vpop.f32.mrb[0].mxu0
      %v1522 = vadd.f32 0.0, %v1521
      %v1523 = vpop.f32.mrb[0].mxu0
      %v1524 = vpop.f32.mrb[0].mxu0
      %v1525 = vadd.f32 0.0, %v1524
      %v1526 = vpop.f32.mrb[0].mxu0
      %1527 = vmatprep.mubr.bf16.mxu0 0
      %1528 = vmatmul.mubr.bf16.gmra.mrb[0].mxu0 %v441
      %v1529 = vpop.f32.mrb[0].mxu0
      %v1530 = vadd.f32 0.0, %v1529
      %v1531 = vpop.f32.mrb[0].mxu0
      %v1532 = vpop.f32.mrb[0].mxu0
      %v1533 = vadd.f32 0.0, %v1532
      %v1534 = vpop.f32.mrb[0].mxu0
      %1535 = vmatprep.mubr.bf16.mxu0 0
      %1536 = vmatmul.mubr.bf16.gmra.mrb[0].mxu0 %v444
      %v1537 = vpop.f32.mrb[0].mxu0
      %v1538 = vadd.f32 0.0, %v1537
      %v1539 = vpop.f32.mrb[0].mxu0
      %v1540 = vpop.f32.mrb[0].mxu0
      %v1541 = vadd.f32 0.0, %v1540
      %v1542 = vpop.f32.mrb[0].mxu0
      %1543 = vmatprep.mubr.bf16.mxu0 0
      %1544 = vmatmul.mubr.bf16.gmra.mrb[0].mxu0 %v447
      %v1545 = vpop.f32.mrb[0].mxu0
      %v1546 = vadd.f32 0.0, %v1545
      %v1547 = vpop.f32.mrb[0].mxu0
      %v1548 = vpop.f32.mrb[0].mxu0
      %v1549 = vadd.f32 0.0, %v1548
      %v1550 = vpop.f32.mrb[0].mxu0
      %1551 = vmatprep.mubr.bf16.mxu0 0
      %1552 = vmatmul.mubr.bf16.gmra.mrb[0].mxu0 %v450
      %v1553 = vpop.f32.mrb[0].mxu0
      %v1554 = vadd.f32 0.0, %v1553
      %v1555 = vpop.f32.mrb[0].mxu0
      %v1556 = vpop.f32.mrb[0].mxu0
      %v1557 = vadd.f32 0.0, %v1556
      %v1558 = vpop.f32.mrb[0].mxu0
      %1559 = vdwg.mxu0
      %v1560 = vsel %vm549, %v1498, -inf
      %1561 = vmax.xlane.f32.xlu0 %v1560
      %v1562 = vpop.xlane.xlu0 %1561
      %v1563 = vsel %vm549, %v1501, -inf
      %1564 = vmax.xlane.f32.xlu0 %v1563
      %v1565 = vpop.xlane.xlu0 %1564
      %v1566 = vsel %vm549, %v1506, -inf
      %1567 = vmax.xlane.f32.xlu0 %v1566
      %v1568 = vpop.xlane.xlu0 %1567
      %v1569 = vsel %vm549, %v1509, -inf
      %1570 = vmax.xlane.f32.xlu0 %v1569
      %v1571 = vpop.xlane.xlu0 %1570
      %v1572 = vsel %vm549, %v1514, -inf
      %1573 = vmax.xlane.f32.xlu0 %v1572
      %v1574 = vpop.xlane.xlu0 %1573
      %v1575 = vsel %vm549, %v1517, -inf
      %1576 = vmax.xlane.f32.xlu0 %v1575
      %v1577 = vpop.xlane.xlu0 %1576
      %v1578 = vsel %vm549, %v1522, -inf
      %1579 = vmax.xlane.f32.xlu0 %v1578
      %v1580 = vpop.xlane.xlu0 %1579
      %v1581 = vsel %vm549, %v1525, -inf
      %1582 = vmax.xlane.f32.xlu0 %v1581
      %v1583 = vpop.xlane.xlu0 %1582
      %v1584 = vsel %vm549, %v1530, -inf
      %1585 = vmax.xlane.f32.xlu0 %v1584
      %v1586 = vpop.xlane.xlu0 %1585
      %v1587 = vsel %vm549, %v1533, -inf
      %1588 = vmax.xlane.f32.xlu0 %v1587
      %v1589 = vpop.xlane.xlu0 %1588
      %v1590 = vsel %vm549, %v1538, -inf
      %1591 = vmax.xlane.f32.xlu0 %v1590
      %v1592 = vpop.xlane.xlu0 %1591
      %v1593 = vsel %vm549, %v1541, -inf
      %1594 = vmax.xlane.f32.xlu0 %v1593
      %v1595 = vpop.xlane.xlu0 %1594
      %v1596 = vsel %vm549, %v1546, -inf
      %1597 = vmax.xlane.f32.xlu0 %v1596
      %v1598 = vpop.xlane.xlu0 %1597
      %v1599 = vsel %vm549, %v1549, -inf
      %1600 = vmax.xlane.f32.xlu0 %v1599
      %v1601 = vpop.xlane.xlu0 %1600
      %v1602 = vsel %vm549, %v1554, -inf
      %1603 = vmax.xlane.f32.xlu0 %v1602
      %v1604 = vpop.xlane.xlu0 %1603
      %v1605 = vsel %vm549, %v1557, -inf
      %1606 = vmax.xlane.f32.xlu0 %v1605
      %v1607 = vpop.xlane.xlu0 %1606
      %v1608 = vsub.f32 %v1498, %v1562
      %v1609 = vsub.f32 %v1501, %v1565
      %v1610 = vsub.f32 %v1506, %v1568
      %v1611 = vsub.f32 %v1509, %v1571
      %v1612 = vsub.f32 %v1514, %v1574
      %v1613 = vsub.f32 %v1517, %v1577
      %v1614 = vsub.f32 %v1522, %v1580
      %v1615 = vsub.f32 %v1525, %v1583
      %v1616 = vsub.f32 %v1530, %v1586
      %v1617 = vsub.f32 %v1533, %v1589
      %v1618 = vsub.f32 %v1538, %v1592
      %v1619 = vsub.f32 %v1541, %v1595
      %v1620 = vsub.f32 %v1546, %v1598
      %v1621 = vsub.f32 %v1549, %v1601
      %v1622 = vsub.f32 %v1554, %v1604
      %v1623 = vsub.f32 %v1557, %v1607
      %v1624 = vmul.f32 %v1608, 1.442695
      %v1625 = vpow.pop %v1624
      %v1626 = vmul.f32 %v1609, 1.442695
      %v1627 = vpow.pop %v1626
      %v1628 = vmul.f32 %v1610, 1.442695
      %v1629 = vpow.pop %v1628
      %v1630 = vmul.f32 %v1611, 1.442695
      %v1631 = vpow.pop %v1630
      %v1632 = vmul.f32 %v1612, 1.442695
      %v1633 = vpow.pop %v1632
      %v1634 = vmul.f32 %v1613, 1.442695
      %v1635 = vpow.pop %v1634
      %v1636 = vmul.f32 %v1614, 1.442695
      %v1637 = vpow.pop %v1636
      %v1638 = vmul.f32 %v1615, 1.442695
      %v1639 = vpow.pop %v1638
      %v1640 = vmul.f32 %v1616, 1.442695
      %v1641 = vpow.pop %v1640
      %v1642 = vmul.f32 %v1617, 1.442695
      %v1643 = vpow.pop %v1642
      %v1644 = vmul.f32 %v1618, 1.442695
      %v1645 = vpow.pop %v1644
      %v1646 = vmul.f32 %v1619, 1.442695
      %v1647 = vpow.pop %v1646
      %v1648 = vmul.f32 %v1620, 1.442695
      %v1649 = vpow.pop %v1648
      %v1650 = vmul.f32 %v1621, 1.442695
      %v1651 = vpow.pop %v1650
      %v1652 = vmul.f32 %v1622, 1.442695
      %v1653 = vpow.pop %v1652
      %v1654 = vmul.f32 %v1623, 1.442695
      %v1655 = vpow.pop %v1654
      %v1656 = vsel %vm549, %v1625, 0.0
      %1657 = vadd.xlane.f32.xlu0 %v1656
      %v1658 = vpop.xlane.xlu0 %1657
      %v1659 = vsel %vm549, %v1627, 0.0
      %1660 = vadd.xlane.f32.xlu0 %v1659
      %v1661 = vpop.xlane.xlu0 %1660
      %v1662 = vsel %vm549, %v1629, 0.0
      %1663 = vadd.xlane.f32.xlu0 %v1662
      %v1664 = vpop.xlane.xlu0 %1663
      %v1665 = vsel %vm549, %v1631, 0.0
      %1666 = vadd.xlane.f32.xlu0 %v1665
      %v1667 = vpop.xlane.xlu0 %1666
      %v1668 = vsel %vm549, %v1633, 0.0
      %1669 = vadd.xlane.f32.xlu0 %v1668
      %v1670 = vpop.xlane.xlu0 %1669
      %v1671 = vsel %vm549, %v1635, 0.0
      %1672 = vadd.xlane.f32.xlu0 %v1671
      %v1673 = vpop.xlane.xlu0 %1672
      %v1674 = vsel %vm549, %v1637, 0.0
      %1675 = vadd.xlane.f32.xlu0 %v1674
      %v1676 = vpop.xlane.xlu0 %1675
      %v1677 = vsel %vm549, %v1639, 0.0
      %1678 = vadd.xlane.f32.xlu0 %v1677
      %v1679 = vpop.xlane.xlu0 %1678
      %v1680 = vsel %vm549, %v1641, 0.0
      %1681 = vadd.xlane.f32.xlu0 %v1680
      %v1682 = vpop.xlane.xlu0 %1681
      %v1683 = vsel %vm549, %v1643, 0.0
      %1684 = vadd.xlane.f32.xlu0 %v1683
      %v1685 = vpop.xlane.xlu0 %1684
      %v1686 = vsel %vm549, %v1645, 0.0
      %1687 = vadd.xlane.f32.xlu0 %v1686
      %v1688 = vpop.xlane.xlu0 %1687
      %v1689 = vsel %vm549, %v1647, 0.0
      %1690 = vadd.xlane.f32.xlu0 %v1689
      %v1691 = vpop.xlane.xlu0 %1690
      %v1692 = vsel %vm549, %v1649, 0.0
      %1693 = vadd.xlane.f32.xlu0 %v1692
      %v1694 = vpop.xlane.xlu0 %1693
      %v1695 = vsel %vm549, %v1651, 0.0
      %1696 = vadd.xlane.f32.xlu0 %v1695
      %v1697 = vpop.xlane.xlu0 %1696
      %v1698 = vsel %vm549, %v1653, 0.0
      %1699 = vadd.xlane.f32.xlu0 %v1698
      %v1700 = vpop.xlane.xlu0 %1699
      %v1701 = vsel %vm549, %v1655, 0.0
      %1702 = vadd.xlane.f32.xlu0 %v1701
      %v1703 = vpop.xlane.xlu0 %1702
      %v1704 = vpack.c.bf16 %v1627, %v1625
      %v1705 = vpack.c.bf16 %v1631, %v1629
      %v1706 = vpack.c.bf16 %v1635, %v1633
      %v1707 = vpack.c.bf16 %v1639, %v1637
      %v1708 = vpack.c.bf16 %v1643, %v1641
      %v1709 = vpack.c.bf16 %v1647, %v1645
      %v1710 = vpack.c.bf16 %v1651, %v1649
      %v1711 = vpack.c.bf16 %v1655, %v1653
      %v1717 = vsel %vm549, %v1704, 0
      %v1720 = vsel %vm549, %v1705, 0
      %v1723 = vsel %vm549, %v1706, 0
      %v1726 = vsel %vm549, %v1707, 0
      %v1729 = vsel %vm549, %v1708, 0
      %v1732 = vsel %vm549, %v1709, 0
      %v1735 = vsel %vm549, %v1710, 0
      %v1738 = vsel %vm549, %v1711, 0
      %1740 = vmatprep.subr.bf16.mxu0 0
      %1741 = vmatpush1.bf16.msra.mxu0 %v1327
      %1742 = vmatprep.subr.bf16.mxu0 0
      %1743 = vmatpush1.bf16.msra.mxu0 %v1329
      %1744 = vmatprep.subr.bf16.mxu0 0
      %1745 = vmatpush1.bf16.msra.mxu0 %v1331
      %1746 = vmatprep.subr.bf16.mxu0 0
      %1747 = vmatpush1.bf16.msra.mxu0 %v1333
      %1748 = vmatprep.subr.bf16.mxu0 0
      %1749 = vmatpush1.bf16.msra.mxu0 0
      %1750 = vmatprep.subr.bf16.mxu0 0
      %1751 = vmatpush1.bf16.msra.mxu0 0
      %1752 = vmatprep.subr.bf16.mxu0 0
      %1753 = vmatpush1.bf16.msra.mxu0 0
      %1754 = vmatprep.subr.bf16.mxu0 0
      %1755 = vmatpush1.bf16.msra.mxu0 0
      %1756 = vmatprep.subr.bf16.mxu0 0
      %1757 = vmatpush1.bf16.msra.mxu0 0
      %1758 = vmatprep.subr.bf16.mxu0 0
      %1759 = vmatpush1.bf16.msra.mxu0 0
      %1760 = vmatprep.subr.bf16.mxu0 0
      %1761 = vmatpush1.bf16.msra.mxu0 0
      %1762 = vmatprep.subr.bf16.mxu0 0
      %1763 = vmatpush1.bf16.msra.mxu0 0
      %1764 = vmatprep.subr.bf16.mxu0 0
      %1765 = vmatpush1.bf16.msra.mxu0 0
      %1766 = vmatprep.subr.bf16.mxu0 0
      %1767 = vmatpush1.bf16.msra.mxu0 0
      %1768 = vmatprep.subr.bf16.mxu0 0
      %1769 = vmatpush1.bf16.msra.mxu0 0
      %1770 = vmatprep.subr.bf16.mxu0 0
      %1771 = vmatpush1.bf16.msra.mxu0 0
      %1772 = vmatprep.mubr.bf16.mxu0 0
      %1773 = vmatmul.mubr.bf16.gmra.mrb[0].mxu0 %v1717
      %v1774 = vpop.f32.mrb[0].mxu0
      %v1775 = vadd.f32 0.0, %v1774
      %v1776 = vpop.f32.mrb[0].mxu0
      %v1777 = vpop.f32.mrb[0].mxu0
      %v1778 = vadd.f32 0.0, %v1777
      %v1779 = vpop.f32.mrb[0].mxu0
      %1780 = vmatprep.mubr.bf16.mxu0 0
      %1781 = vmatmul.mubr.bf16.gmra.mrb[0].mxu0 %v1720
      %v1782 = vpop.f32.mrb[0].mxu0
      %v1783 = vadd.f32 0.0, %v1782
      %v1784 = vpop.f32.mrb[0].mxu0
      %v1785 = vpop.f32.mrb[0].mxu0
      %v1786 = vadd.f32 0.0, %v1785
      %v1787 = vpop.f32.mrb[0].mxu0
      %1788 = vmatprep.mubr.bf16.mxu0 0
      %1789 = vmatmul.mubr.bf16.gmra.mrb[0].mxu0 %v1723
      %v1790 = vpop.f32.mrb[0].mxu0
      %v1791 = vadd.f32 0.0, %v1790
      %v1792 = vpop.f32.mrb[0].mxu0
      %v1793 = vpop.f32.mrb[0].mxu0
      %v1794 = vadd.f32 0.0, %v1793
      %v1795 = vpop.f32.mrb[0].mxu0
      %1796 = vmatprep.mubr.bf16.mxu0 0
      %1797 = vmatmul.mubr.bf16.gmra.mrb[0].mxu0 %v1726
      %v1798 = vpop.f32.mrb[0].mxu0
      %v1799 = vadd.f32 0.0, %v1798
      %v1800 = vpop.f32.mrb[0].mxu0
      %v1801 = vpop.f32.mrb[0].mxu0
      %v1802 = vadd.f32 0.0, %v1801
      %v1803 = vpop.f32.mrb[0].mxu0
      %1804 = vmatprep.mubr.bf16.mxu0 0
      %1805 = vmatmul.mubr.bf16.gmra.mrb[0].mxu0 %v1729
      %v1806 = vpop.f32.mrb[0].mxu0
      %v1807 = vadd.f32 0.0, %v1806
      %v1808 = vpop.f32.mrb[0].mxu0
      %v1809 = vpop.f32.mrb[0].mxu0
      %v1810 = vadd.f32 0.0, %v1809
      %v1811 = vpop.f32.mrb[0].mxu0
      %1812 = vmatprep.mubr.bf16.mxu0 0
      %1813 = vmatmul.mubr.bf16.gmra.mrb[0].mxu0 %v1732
      %v1814 = vpop.f32.mrb[0].mxu0
      %v1815 = vadd.f32 0.0, %v1814
      %v1816 = vpop.f32.mrb[0].mxu0
      %v1817 = vpop.f32.mrb[0].mxu0
      %v1818 = vadd.f32 0.0, %v1817
      %v1819 = vpop.f32.mrb[0].mxu0
      %1820 = vmatprep.mubr.bf16.mxu0 0
      %1821 = vmatmul.mubr.bf16.gmra.mrb[0].mxu0 %v1735
      %v1822 = vpop.f32.mrb[0].mxu0
      %v1823 = vadd.f32 0.0, %v1822
      %v1824 = vpop.f32.mrb[0].mxu0
      %v1825 = vpop.f32.mrb[0].mxu0
      %v1826 = vadd.f32 0.0, %v1825
      %v1827 = vpop.f32.mrb[0].mxu0
      %1828 = vmatprep.mubr.bf16.mxu0 0
      %1829 = vmatmul.mubr.bf16.gmra.mrb[0].mxu0 %v1738
      %v1830 = vpop.f32.mrb[0].mxu0
      %v1831 = vadd.f32 0.0, %v1830
      %v1832 = vpop.f32.mrb[0].mxu0
      %v1833 = vpop.f32.mrb[0].mxu0
      %v1834 = vadd.f32 0.0, %v1833
      %v1835 = vpop.f32.mrb[0].mxu0
      %1836 = vdwg.mxu0
      %v1837 = vrcp.pop %v1658
      %v1838 = vrcp.pop %v1661
      %v1839 = vrcp.pop %v1664
      %v1840 = vrcp.pop %v1667
      %v1841 = vrcp.pop %v1670
      %v1842 = vrcp.pop %v1673
      %v1843 = vrcp.pop %v1676
      %v1844 = vrcp.pop %v1679
      %v1845 = vrcp.pop %v1682
      %v1846 = vrcp.pop %v1685
      %v1847 = vrcp.pop %v1688
      %v1848 = vrcp.pop %v1691
      %v1849 = vrcp.pop %v1694
      %v1850 = vrcp.pop %v1697
      %v1851 = vrcp.pop %v1700
      %v1852 = vrcp.pop %v1703
      %v1853 = vmul.f32 %v1775, %v1837
      %v1854 = vmul.f32 %v1778, %v1838
      %v1855 = vmul.f32 %v1783, %v1839
      %v1856 = vmul.f32 %v1786, %v1840
      %v1857 = vmul.f32 %v1791, %v1841
      %v1858 = vmul.f32 %v1794, %v1842
      %v1859 = vmul.f32 %v1799, %v1843
      %v1860 = vmul.f32 %v1802, %v1844
      %v1861 = vmul.f32 %v1807, %v1845
      %v1862 = vmul.f32 %v1810, %v1846
      %v1863 = vmul.f32 %v1815, %v1847
      %v1864 = vmul.f32 %v1818, %v1848
      %v1865 = vmul.f32 %v1823, %v1849
      %v1866 = vmul.f32 %v1826, %v1850
      %v1867 = vmul.f32 %v1831, %v1851
      %v1868 = vmul.f32 %v1834, %v1852
      %v1869 = vadd.f32 %v1853, %v1861
      %v1870 = vadd.f32 %v1854, %v1862
      %v1871 = vadd.f32 %v1855, %v1863
      %v1872 = vadd.f32 %v1856, %v1864
      %v1873 = vadd.f32 %v1857, %v1865
      %v1874 = vadd.f32 %v1858, %v1866
      %v1875 = vadd.f32 %v1859, %v1867
      %v1876 = vadd.f32 %v1860, %v1868
      %1877 = vst.msk [vmem:[#allocation2 + $0x40] sm:$0xff] %vm879, %v1869
      %1878 = vst.msk [vmem:[#allocation2 + $0x48] sm:$0xff] %vm879, %v1870
      %1879 = vst.msk [vmem:[#allocation2 + $0x50] sm:$0xff] %vm879, %v1871
      %1880 = vst.msk [vmem:[#allocation2 + $0x58] sm:$0xff] %vm879, %v1872
      %1881 = vst.msk [vmem:[#allocation2 + $0x60] sm:$0xff] %vm879, %v1873
      %1882 = vst.msk [vmem:[#allocation2 + $0x68] sm:$0xff] %vm879, %v1874
      %1883 = vst.msk [vmem:[#allocation2 + $0x70] sm:$0xff] %vm879, %v1875
      %1884 = vst.msk [vmem:[#allocation2 + $0x78] sm:$0xff] %vm879, %v1876
      %v1885 = vpack.c.bf16 %v1854, %v1853
      %v1886 = vpack.c.bf16 %v1856, %v1855
      %v1887 = vpack.c.bf16 %v1858, %v1857
      %v1888 = vpack.c.bf16 %v1860, %v1859
      %v1889 = vpack.c.bf16 %v1862, %v1861
      %v1890 = vpack.c.bf16 %v1864, %v1863
      %v1891 = vpack.c.bf16 %v1866, %v1865
      %v1892 = vpack.c.bf16 %v1868, %v1867
      %v1893 = vunpack.c.l.bf16 %v422
      %v1894 = vunpack.c.h.bf16 %v422
      %v1895 = vunpack.c.l.bf16 %v423
      %v1896 = vunpack.c.h.bf16 %v423
      %v1897 = vunpack.c.l.bf16 %v424
      %v1898 = vunpack.c.h.bf16 %v424
      %v1899 = vunpack.c.l.bf16 %v425
      %v1900 = vunpack.c.h.bf16 %v425
      %1909 = vrot.lane.b32.xlu0 %v1893, 104
      %v1910 = vpop.permute.xlu0 %1909
      %1911 = vrot.lane.b32.xlu0 %v1894, 104
      %v1912 = vpop.permute.xlu0 %1911
      %1913 = vrot.lane.b32.xlu0 %v1895, 104
      %v1914 = vpop.permute.xlu0 %1913
      %1915 = vrot.lane.b32.xlu0 %v1896, 104
      %v1916 = vpop.permute.xlu0 %1915
      %1917 = vrot.lane.b32.xlu0 %v1897, 104
      %v1918 = vpop.permute.xlu0 %1917
      %1919 = vrot.lane.b32.xlu0 %v1898, 104
      %v1920 = vpop.permute.xlu0 %1919
      %1921 = vrot.lane.b32.xlu0 %v1899, 104
      %v1922 = vpop.permute.xlu0 %1921
      %1923 = vrot.lane.b32.xlu0 %v1900, 104
      %v1924 = vpop.permute.xlu0 %1923
      %v1933 = vmul.f32 %v1853, %v1910
      %v1934 = vmul.f32 %v1854, %v1912
      %v1935 = vmul.f32 %v1855, %v1914
      %v1936 = vmul.f32 %v1856, %v1916
      %v1937 = vmul.f32 %v1857, %v1918
      %v1938 = vmul.f32 %v1858, %v1920
      %v1939 = vmul.f32 %v1859, %v1922
      %v1940 = vmul.f32 %v1860, %v1924
      %v1941 = vmul.f32 %v1861, %v1910
      %v1942 = vmul.f32 %v1862, %v1912
      %v1943 = vmul.f32 %v1863, %v1914
      %v1944 = vmul.f32 %v1864, %v1916
      %v1945 = vmul.f32 %v1865, %v1918
      %v1946 = vmul.f32 %v1866, %v1920
      %v1947 = vmul.f32 %v1867, %v1922
      %v1948 = vmul.f32 %v1868, %v1924
      %v1949 = vpack.c.bf16 %v1934, %v1933
      %v1950 = vpack.c.bf16 %v1936, %v1935
      %v1951 = vpack.c.bf16 %v1938, %v1937
      %v1952 = vpack.c.bf16 %v1940, %v1939
      %v1953 = vpack.c.bf16 %v1942, %v1941
      %v1954 = vpack.c.bf16 %v1944, %v1943
      %v1955 = vpack.c.bf16 %v1946, %v1945
      %v1956 = vpack.c.bf16 %v1948, %v1947
      %1957 = vrot.lane.b32.xlu0 %v422, 116
      %v1958 = vpop.permute.xlu0 %1957
      %1959 = vrot.lane.b32.xlu0 %v423, 116
      %v1960 = vpop.permute.xlu0 %1959
      %1961 = vrot.lane.b32.xlu0 %v424, 116
      %v1962 = vpop.permute.xlu0 %1961
      %1963 = vrot.lane.b32.xlu0 %v425, 116
      %v1964 = vpop.permute.xlu0 %1963
      %1973 = vrot.lane.b32.xlu0 %v1949, 24
      %v1974 = vpop.permute.xlu0 %1973
      %1975 = vrot.lane.b32.xlu0 %v1950, 24
      %v1976 = vpop.permute.xlu0 %1975
      %1977 = vrot.lane.b32.xlu0 %v1951, 24
      %v1978 = vpop.permute.xlu0 %1977
      %1979 = vrot.lane.b32.xlu0 %v1952, 24
      %v1980 = vpop.permute.xlu0 %1979
      %1981 = vrot.lane.b32.xlu0 %v1953, 24
      %v1982 = vpop.permute.xlu0 %1981
      %1983 = vrot.lane.b32.xlu0 %v1954, 24
      %v1984 = vpop.permute.xlu0 %1983
      %1985 = vrot.lane.b32.xlu0 %v1955, 24
      %v1986 = vpop.permute.xlu0 %1985
      %1987 = vrot.lane.b32.xlu0 %v1956, 24
      %v1988 = vpop.permute.xlu0 %1987
      %v1991 = vsel %vm879, %v1885, %v1958
      %v1994 = vsel %vm879, %v1886, %v1960
      %v1997 = vsel %vm879, %v1887, %v1962
      %v2000 = vsel %vm879, %v1888, %v1964
      %v2002 = vsel %vm879, %v1889, %v1958
      %v2004 = vsel %vm879, %v1890, %v1960
      %v2006 = vsel %vm879, %v1891, %v1962
      %v2008 = vsel %vm879, %v1892, %v1964
      %v2010 = vsel %vm292, %v1991, %v1974
      %v2012 = vsel %vm292, %v1994, %v1976
      %v2014 = vsel %vm292, %v1997, %v1978
      %v2016 = vsel %vm292, %v2000, %v1980
      %v2018 = vsel %vm292, %v2002, %v1982
      %v2020 = vsel %vm292, %v2004, %v1984
      %v2022 = vsel %vm292, %v2006, %v1986
      %v2024 = vsel %vm292, %v2008, %v1988
      %v2025 = vld [vmem:[%s2] sm:$0xf]
      %v2026 = vld [vmem:[%s2 + $0x4] sm:$0xf]
      %v2027 = vld [vmem:[%s2 + $0x8] sm:$0xf]
      %v2028 = vld [vmem:[%s2 + $0xc] sm:$0xf]
      %v2029 = vld [vmem:[%s2 + $0x10] sm:$0x3]
      %v2035 = vunpack.c.l.b16 %v2025
      %v2036 = vunpack.c.l.b16 %v2026
      %v2037 = vunpack.c.l.b16 %v2027
      %v2038 = vunpack.c.l.b16 %v2028
      %v2039 = vunpack.c.l.b16 %v2029
      %v2040 = vpack.c.b16 %v2036, %v2035
      %v2041 = vpack.c.b16 %v2038, %v2037
      %v2042 = vpack.c.b16 %v2039, %v2039
      %v2045 = vsel %vm1048, %v2010, 0
      %v2047 = vsel %vm1048, %v2012, 0
      %v2049 = vsel %vm1048, %v2014, 0
      %v2051 = vsel %vm1048, %v2016, 0
      %v2053 = vsel %vm1048, %v2018, 0
      %v2055 = vsel %vm1048, %v2020, 0
      %v2057 = vsel %vm1048, %v2022, 0
      %v2059 = vsel %vm1048, %v2024, 0
      %v2062 = vsel %vm1065, %v2042, 0
      %2064 = vmatprep.subr.bf16.mxu0 0
      %2065 = vmatpush1.bf16.msra.mxu0 %v2040
      %2066 = vmatprep.subr.bf16.mxu0 0
      %2067 = vmatpush1.bf16.msra.mxu0 %v2041
      %2068 = vmatprep.subr.bf16.mxu0 0
      %2069 = vmatpush1.bf16.msra.mxu0 %v2062
      %2070 = vmatprep.subr.bf16.mxu0 0
      %2071 = vmatpush1.bf16.msra.mxu0 0
      %2072 = vmatprep.subr.bf16.mxu0 0
      %2073 = vmatpush1.bf16.msra.mxu0 0
      %2074 = vmatprep.subr.bf16.mxu0 0
      %2075 = vmatpush1.bf16.msra.mxu0 0
      %2076 = vmatprep.subr.bf16.mxu0 0
      %2077 = vmatpush1.bf16.msra.mxu0 0
      %2078 = vmatprep.subr.bf16.mxu0 0
      %2079 = vmatpush1.bf16.msra.mxu0 0
      %2080 = vmatprep.subr.bf16.mxu0 0
      %2081 = vmatpush1.bf16.msra.mxu0 0
      %2082 = vmatprep.subr.bf16.mxu0 0
      %2083 = vmatpush1.bf16.msra.mxu0 0
      %2084 = vmatprep.subr.bf16.mxu0 0
      %2085 = vmatpush1.bf16.msra.mxu0 0
      %2086 = vmatprep.subr.bf16.mxu0 0
      %2087 = vmatpush1.bf16.msra.mxu0 0
      %2088 = vmatprep.subr.bf16.mxu0 0
      %2089 = vmatpush1.bf16.msra.mxu0 0
      %2090 = vmatprep.subr.bf16.mxu0 0
      %2091 = vmatpush1.bf16.msra.mxu0 0
      %2092 = vmatprep.subr.bf16.mxu0 0
      %2093 = vmatpush1.bf16.msra.mxu0 0
      %2094 = vmatprep.subr.bf16.mxu0 0
      %2095 = vmatpush1.bf16.msra.mxu0 0
      %2096 = vmatprep.mubr.bf16.mxu0 0
      %2097 = vmatmul.mubr.bf16.gmra.mrb[0].mxu0 %v2045
      %v2098 = vpop.f32.mrb[0].mxu0
      %v2099 = vadd.f32 0.0, %v2098
      %v2100 = vpop.f32.mrb[0].mxu0
      %v2101 = vpop.f32.mrb[0].mxu0
      %v2102 = vadd.f32 0.0, %v2101
      %v2103 = vpop.f32.mrb[0].mxu0
      %2104 = vmatprep.mubr.bf16.mxu0 0
      %2105 = vmatmul.mubr.bf16.gmra.mrb[0].mxu0 %v2047
      %v2106 = vpop.f32.mrb[0].mxu0
      %v2107 = vadd.f32 0.0, %v2106
      %v2108 = vpop.f32.mrb[0].mxu0
      %v2109 = vpop.f32.mrb[0].mxu0
      %v2110 = vadd.f32 0.0, %v2109
      %v2111 = vpop.f32.mrb[0].mxu0
      %2112 = vmatprep.mubr.bf16.mxu0 0
      %2113 = vmatmul.mubr.bf16.gmra.mrb[0].mxu0 %v2049
      %v2114 = vpop.f32.mrb[0].mxu0
      %v2115 = vadd.f32 0.0, %v2114
      %v2116 = vpop.f32.mrb[0].mxu0
      %v2117 = vpop.f32.mrb[0].mxu0
      %v2118 = vadd.f32 0.0, %v2117
      %v2119 = vpop.f32.mrb[0].mxu0
      %2120 = vmatprep.mubr.bf16.mxu0 0
      %2121 = vmatmul.mubr.bf16.gmra.mrb[0].mxu0 %v2051
      %v2122 = vpop.f32.mrb[0].mxu0
      %v2123 = vadd.f32 0.0, %v2122
      %v2124 = vpop.f32.mrb[0].mxu0
      %v2125 = vpop.f32.mrb[0].mxu0
      %v2126 = vadd.f32 0.0, %v2125
      %v2127 = vpop.f32.mrb[0].mxu0
      %2128 = vmatprep.mubr.bf16.mxu0 0
      %2129 = vmatmul.mubr.bf16.gmra.mrb[0].mxu0 %v2053
      %v2130 = vpop.f32.mrb[0].mxu0
      %v2131 = vadd.f32 0.0, %v2130
      %v2132 = vpop.f32.mrb[0].mxu0
      %v2133 = vpop.f32.mrb[0].mxu0
      %v2134 = vadd.f32 0.0, %v2133
      %v2135 = vpop.f32.mrb[0].mxu0
      %2136 = vmatprep.mubr.bf16.mxu0 0
      %2137 = vmatmul.mubr.bf16.gmra.mrb[0].mxu0 %v2055
      %v2138 = vpop.f32.mrb[0].mxu0
      %v2139 = vadd.f32 0.0, %v2138
      %v2140 = vpop.f32.mrb[0].mxu0
      %v2141 = vpop.f32.mrb[0].mxu0
      %v2142 = vadd.f32 0.0, %v2141
      %v2143 = vpop.f32.mrb[0].mxu0
      %2144 = vmatprep.mubr.bf16.mxu0 0
      %2145 = vmatmul.mubr.bf16.gmra.mrb[0].mxu0 %v2057
      %v2146 = vpop.f32.mrb[0].mxu0
      %v2147 = vadd.f32 0.0, %v2146
      %v2148 = vpop.f32.mrb[0].mxu0
      %v2149 = vpop.f32.mrb[0].mxu0
      %v2150 = vadd.f32 0.0, %v2149
      %v2151 = vpop.f32.mrb[0].mxu0
      %2152 = vmatprep.mubr.bf16.mxu0 0
      %2153 = vmatmul.mubr.bf16.gmra.mrb[0].mxu0 %v2059
      %v2154 = vpop.f32.mrb[0].mxu0
      %v2155 = vadd.f32 0.0, %v2154
      %v2156 = vpop.f32.mrb[0].mxu0
      %v2157 = vpop.f32.mrb[0].mxu0
      %v2158 = vadd.f32 0.0, %v2157
      %v2159 = vpop.f32.mrb[0].mxu0
      %2160 = vdwg.mxu0
      %v2161 = vmax.f32 %v2099, 0.0
      %v2162 = vmax.f32 %v2102, 0.0
      %v2163 = vmax.f32 %v2107, 0.0
      %v2164 = vmax.f32 %v2110, 0.0
      %v2165 = vmax.f32 %v2115, 0.0
      %v2166 = vmax.f32 %v2118, 0.0
      %v2167 = vmax.f32 %v2123, 0.0
      %v2168 = vmax.f32 %v2126, 0.0
      %v2169 = vmax.f32 %v2131, 0.0
      %v2170 = vmax.f32 %v2134, 0.0
      %v2171 = vmax.f32 %v2139, 0.0
      %v2172 = vmax.f32 %v2142, 0.0
      %v2173 = vmax.f32 %v2147, 0.0
      %v2174 = vmax.f32 %v2150, 0.0
      %v2175 = vmax.f32 %v2155, 0.0
      %v2176 = vmax.f32 %v2158, 0.0
      %v2177 = vpack.c.bf16 %v2162, %v2161
      %v2178 = vpack.c.bf16 %v2164, %v2163
      %v2179 = vpack.c.bf16 %v2166, %v2165
      %v2180 = vpack.c.bf16 %v2168, %v2167
      %v2181 = vpack.c.bf16 %v2170, %v2169
      %v2182 = vpack.c.bf16 %v2172, %v2171
      %v2183 = vpack.c.bf16 %v2174, %v2173
      %v2184 = vpack.c.bf16 %v2176, %v2175
      %s2185 = scalar_lea.vmem %s5, 8
      %v2186 = vld [vmem:[%s2185] sm:$0xf]
      %v2187 = vld [vmem:[%s2185 + $0x4] sm:$0x3]
      %v2190 = vunpack.c.l.b16 %v2186
      %v2191 = vunpack.c.l.b16 %v2187
      %v2192 = vpack.c.b16 %v2191, %v2190
      %v2194 = vsel %vm879, %v2177, 0
      %v2197 = vsel %vm879, %v2178, 0
      %v2200 = vsel %vm879, %v2179, 0
      %v2203 = vsel %vm879, %v2180, 0
      %v2206 = vsel %vm879, %v2181, 0
      %v2209 = vsel %vm879, %v2182, 0
      %v2212 = vsel %vm879, %v2183, 0
      %v2215 = vsel %vm879, %v2184, 0
      %v2218 = vsel %vm1221, %v2192, 0
      %2220 = vmatprep.subr.bf16.mxu0 0
      %2221 = vmatpush1.bf16.msra.mxu0 %v2218
      %2222 = vmatprep.subr.bf16.mxu0 0
      %2223 = vmatpush1.bf16.msra.mxu0 0
      %2224 = vmatprep.subr.bf16.mxu0 0
      %2225 = vmatpush1.bf16.msra.mxu0 0
      %2226 = vmatprep.subr.bf16.mxu0 0
      %2227 = vmatpush1.bf16.msra.mxu0 0
      %2228 = vmatprep.subr.bf16.mxu0 0
      %2229 = vmatpush1.bf16.msra.mxu0 0
      %2230 = vmatprep.subr.bf16.mxu0 0
      %2231 = vmatpush1.bf16.msra.mxu0 0
      %2232 = vmatprep.subr.bf16.mxu0 0
      %2233 = vmatpush1.bf16.msra.mxu0 0
      %2234 = vmatprep.subr.bf16.mxu0 0
      %2235 = vmatpush1.bf16.msra.mxu0 0
      %2236 = vmatprep.subr.bf16.mxu0 0
      %2237 = vmatpush1.bf16.msra.mxu0 0
      %2238 = vmatprep.subr.bf16.mxu0 0
      %2239 = vmatpush1.bf16.msra.mxu0 0
      %2240 = vmatprep.subr.bf16.mxu0 0
      %2241 = vmatpush1.bf16.msra.mxu0 0
      %2242 = vmatprep.subr.bf16.mxu0 0
      %2243 = vmatpush1.bf16.msra.mxu0 0
      %2244 = vmatprep.subr.bf16.mxu0 0
      %2245 = vmatpush1.bf16.msra.mxu0 0
      %2246 = vmatprep.subr.bf16.mxu0 0
      %2247 = vmatpush1.bf16.msra.mxu0 0
      %2248 = vmatprep.subr.bf16.mxu0 0
      %2249 = vmatpush1.bf16.msra.mxu0 0
      %2250 = vmatprep.subr.bf16.mxu0 0
      %2251 = vmatpush1.bf16.msra.mxu0 0
      %2252 = vmatprep.mubr.bf16.mxu0 0
      %2253 = vmatmul.mubr.bf16.gmra.mrb[0].mxu0 %v2194
      %v2254 = vpop.f32.mrb[0].mxu0
      %v2255 = vadd.f32 0.0, %v2254
      %v2256 = vpop.f32.mrb[0].mxu0
      %v2257 = vpop.f32.mrb[0].mxu0
      %v2258 = vadd.f32 0.0, %v2257
      %v2259 = vpop.f32.mrb[0].mxu0
      %2260 = vmatprep.mubr.bf16.mxu0 0
      %2261 = vmatmul.mubr.bf16.gmra.mrb[0].mxu0 %v2197
      %v2262 = vpop.f32.mrb[0].mxu0
      %v2263 = vadd.f32 0.0, %v2262
      %v2264 = vpop.f32.mrb[0].mxu0
      %v2265 = vpop.f32.mrb[0].mxu0
      %v2266 = vadd.f32 0.0, %v2265
      %v2267 = vpop.f32.mrb[0].mxu0
      %2268 = vmatprep.mubr.bf16.mxu0 0
      %2269 = vmatmul.mubr.bf16.gmra.mrb[0].mxu0 %v2200
      %v2270 = vpop.f32.mrb[0].mxu0
      %v2271 = vadd.f32 0.0, %v2270
      %v2272 = vpop.f32.mrb[0].mxu0
      %v2273 = vpop.f32.mrb[0].mxu0
      %v2274 = vadd.f32 0.0, %v2273
      %v2275 = vpop.f32.mrb[0].mxu0
      %2276 = vmatprep.mubr.bf16.mxu0 0
      %2277 = vmatmul.mubr.bf16.gmra.mrb[0].mxu0 %v2203
      %v2278 = vpop.f32.mrb[0].mxu0
      %v2279 = vadd.f32 0.0, %v2278
      %v2280 = vpop.f32.mrb[0].mxu0
      %v2281 = vpop.f32.mrb[0].mxu0
      %v2282 = vadd.f32 0.0, %v2281
      %v2283 = vpop.f32.mrb[0].mxu0
      %2284 = vmatprep.mubr.bf16.mxu0 0
      %2285 = vmatmul.mubr.bf16.gmra.mrb[0].mxu0 %v2206
      %v2286 = vpop.f32.mrb[0].mxu0
      %v2287 = vadd.f32 0.0, %v2286
      %v2288 = vpop.f32.mrb[0].mxu0
      %v2289 = vpop.f32.mrb[0].mxu0
      %v2290 = vadd.f32 0.0, %v2289
      %v2291 = vpop.f32.mrb[0].mxu0
      %2292 = vmatprep.mubr.bf16.mxu0 0
      %2293 = vmatmul.mubr.bf16.gmra.mrb[0].mxu0 %v2209
      %v2294 = vpop.f32.mrb[0].mxu0
      %v2295 = vadd.f32 0.0, %v2294
      %v2296 = vpop.f32.mrb[0].mxu0
      %v2297 = vpop.f32.mrb[0].mxu0
      %v2298 = vadd.f32 0.0, %v2297
      %v2299 = vpop.f32.mrb[0].mxu0
      %2300 = vmatprep.mubr.bf16.mxu0 0
      %2301 = vmatmul.mubr.bf16.gmra.mrb[0].mxu0 %v2212
      %v2302 = vpop.f32.mrb[0].mxu0
      %v2303 = vadd.f32 0.0, %v2302
      %v2304 = vpop.f32.mrb[0].mxu0
      %v2305 = vpop.f32.mrb[0].mxu0
      %v2306 = vadd.f32 0.0, %v2305
      %v2307 = vpop.f32.mrb[0].mxu0
      %2308 = vmatprep.mubr.bf16.mxu0 0
      %2309 = vmatmul.mubr.bf16.gmra.mrb[0].mxu0 %v2215
      %v2310 = vpop.f32.mrb[0].mxu0
      %v2311 = vadd.f32 0.0, %v2310
      %v2312 = vpop.f32.mrb[0].mxu0
      %v2313 = vpop.f32.mrb[0].mxu0
      %v2314 = vadd.f32 0.0, %v2313
      %v2315 = vpop.f32.mrb[0].mxu0
      %2316 = vdwg.mxu0
      %v2317 = vadd.f32 %v1401, %v2255
      %v2318 = vadd.f32 %v1404, %v2258
      %v2319 = vadd.f32 %v1409, %v2263
      %v2320 = vadd.f32 %v1412, %v2266
      %v2321 = vadd.f32 %v1417, %v2271
      %v2322 = vadd.f32 %v1420, %v2274
      %v2323 = vadd.f32 %v1425, %v2279
      %v2324 = vadd.f32 %v1428, %v2282
      %v2325 = vadd.f32 %v1433, %v2287
      %v2326 = vadd.f32 %v1436, %v2290
      %v2327 = vadd.f32 %v1441, %v2295
      %v2328 = vadd.f32 %v1444, %v2298
      %v2329 = vadd.f32 %v1449, %v2303
      %v2330 = vadd.f32 %v1452, %v2306
      %v2331 = vadd.f32 %v1457, %v2311
      %v2332 = vadd.f32 %v1460, %v2314
      %v2333 = vld [vmem:[#allocation2] sm:$0xff]
      %v2334 = vld [vmem:[#allocation2 + $0x8] sm:$0xff]
      %v2335 = vld [vmem:[#allocation2 + $0x10] sm:$0xff]
      %v2336 = vld [vmem:[#allocation2 + $0x18] sm:$0xff]
      %v2337 = vld [vmem:[#allocation2 + $0x20] sm:$0xff]
      %v2338 = vld [vmem:[#allocation2 + $0x28] sm:$0xff]
      %v2339 = vld [vmem:[#allocation2 + $0x30] sm:$0xff]
      %v2340 = vld [vmem:[#allocation2 + $0x38] sm:$0xff]
      %v2341 = vld [vmem:[#allocation2 + $0x40] sm:$0xff]
      %v2342 = vld [vmem:[#allocation2 + $0x48] sm:$0xff]
      %v2343 = vld [vmem:[#allocation2 + $0x50] sm:$0xff]
      %v2344 = vld [vmem:[#allocation2 + $0x58] sm:$0xff]
      %v2345 = vld [vmem:[#allocation2 + $0x60] sm:$0xff]
      %v2346 = vld [vmem:[#allocation2 + $0x68] sm:$0xff]
      %v2347 = vld [vmem:[#allocation2 + $0x70] sm:$0xff]
      %v2348 = vld [vmem:[#allocation2 + $0x78] sm:$0xff]
      %v2349 = vpack.c.bf16 %v2334, %v2333
      %v2350 = vpack.c.bf16 %v2336, %v2335
      %v2351 = vpack.c.bf16 %v2338, %v2337
      %v2352 = vpack.c.bf16 %v2340, %v2339
      %v2353 = vpack.c.bf16 %v2342, %v2341
      %v2354 = vpack.c.bf16 %v2344, %v2343
      %v2355 = vpack.c.bf16 %v2346, %v2345
      %v2356 = vpack.c.bf16 %v2348, %v2347
      %v2357 = vld [vmem:[%s3] sm:$0xf]
      %v2358 = vld [vmem:[%s3 + $0x4] sm:$0x3]
      %v2361 = vunpack.c.l.b16 %v2357
      %v2362 = vunpack.c.l.b16 %v2358
      %v2363 = vpack.c.b16 %v2362, %v2361
      %v2365 = vsel %vm879, %v2349, 0
      %v2368 = vsel %vm879, %v2350, 0
      %v2371 = vsel %vm879, %v2351, 0
      %v2374 = vsel %vm879, %v2352, 0
      %v2377 = vsel %vm879, %v2353, 0
      %v2380 = vsel %vm879, %v2354, 0
      %v2383 = vsel %vm879, %v2355, 0
      %v2386 = vsel %vm879, %v2356, 0
      %v2389 = vsel %vm1221, %v2363, 0
      %2391 = vmatprep.subr.bf16.mxu0 0
      %2392 = vmatpush1.bf16.msra.mxu0 %v2389
      %2393 = vmatprep.subr.bf16.mxu0 0
      %2394 = vmatpush1.bf16.msra.mxu0 0
      %2395 = vmatprep.subr.bf16.mxu0 0
      %2396 = vmatpush1.bf16.msra.mxu0 0
      %2397 = vmatprep.subr.bf16.mxu0 0
      %2398 = vmatpush1.bf16.msra.mxu0 0
      %2399 = vmatprep.subr.bf16.mxu0 0
      %2400 = vmatpush1.bf16.msra.mxu0 0
      %2401 = vmatprep.subr.bf16.mxu0 0
      %2402 = vmatpush1.bf16.msra.mxu0 0
      %2403 = vmatprep.subr.bf16.mxu0 0
      %2404 = vmatpush1.bf16.msra.mxu0 0
      %2405 = vmatprep.subr.bf16.mxu0 0
      %2406 = vmatpush1.bf16.msra.mxu0 0
      %2407 = vmatprep.subr.bf16.mxu0 0
      %2408 = vmatpush1.bf16.msra.mxu0 0
      %2409 = vmatprep.subr.bf16.mxu0 0
      %2410 = vmatpush1.bf16.msra.mxu0 0
      %2411 = vmatprep.subr.bf16.mxu0 0
      %2412 = vmatpush1.bf16.msra.mxu0 0
      %2413 = vmatprep.subr.bf16.mxu0 0
      %2414 = vmatpush1.bf16.msra.mxu0 0
      %2415 = vmatprep.subr.bf16.mxu0 0
      %2416 = vmatpush1.bf16.msra.mxu0 0
      %2417 = vmatprep.subr.bf16.mxu0 0
      %2418 = vmatpush1.bf16.msra.mxu0 0
      %2419 = vmatprep.subr.bf16.mxu0 0
      %2420 = vmatpush1.bf16.msra.mxu0 0
      %2421 = vmatprep.subr.bf16.mxu0 0
      %2422 = vmatpush1.bf16.msra.mxu0 0
      %2423 = vmatprep.mubr.bf16.mxu0 0
      %2424 = vmatmul.mubr.bf16.gmra.mrb[0].mxu0 %v2365
      %v2425 = vpop.f32.mrb[0].mxu0
      %v2426 = vadd.f32 0.0, %v2425
      %v2427 = vpop.f32.mrb[0].mxu0
      %v2428 = vpop.f32.mrb[0].mxu0
      %v2429 = vadd.f32 0.0, %v2428
      %v2430 = vpop.f32.mrb[0].mxu0
      %2431 = vmatprep.mubr.bf16.mxu0 0
      %2432 = vmatmul.mubr.bf16.gmra.mrb[0].mxu0 %v2368
      %v2433 = vpop.f32.mrb[0].mxu0
      %v2434 = vadd.f32 0.0, %v2433
      %v2435 = vpop.f32.mrb[0].mxu0
      %v2436 = vpop.f32.mrb[0].mxu0
      %v2437 = vadd.f32 0.0, %v2436
      %v2438 = vpop.f32.mrb[0].mxu0
      %2439 = vmatprep.mubr.bf16.mxu0 0
      %2440 = vmatmul.mubr.bf16.gmra.mrb[0].mxu0 %v2371
      %v2441 = vpop.f32.mrb[0].mxu0
      %v2442 = vadd.f32 0.0, %v2441
      %v2443 = vpop.f32.mrb[0].mxu0
      %v2444 = vpop.f32.mrb[0].mxu0
      %v2445 = vadd.f32 0.0, %v2444
      %v2446 = vpop.f32.mrb[0].mxu0
      %2447 = vmatprep.mubr.bf16.mxu0 0
      %2448 = vmatmul.mubr.bf16.gmra.mrb[0].mxu0 %v2374
      %v2449 = vpop.f32.mrb[0].mxu0
      %v2450 = vadd.f32 0.0, %v2449
      %v2451 = vpop.f32.mrb[0].mxu0
      %v2452 = vpop.f32.mrb[0].mxu0
      %v2453 = vadd.f32 0.0, %v2452
      %v2454 = vpop.f32.mrb[0].mxu0
      %2455 = vmatprep.mubr.bf16.mxu0 0
      %2456 = vmatmul.mubr.bf16.gmra.mrb[0].mxu0 %v2377
      %v2457 = vpop.f32.mrb[0].mxu0
      %v2458 = vadd.f32 0.0, %v2457
      %v2459 = vpop.f32.mrb[0].mxu0
      %v2460 = vpop.f32.mrb[0].mxu0
      %v2461 = vadd.f32 0.0, %v2460
      %v2462 = vpop.f32.mrb[0].mxu0
      %2463 = vmatprep.mubr.bf16.mxu0 0
      %2464 = vmatmul.mubr.bf16.gmra.mrb[0].mxu0 %v2380
      %v2465 = vpop.f32.mrb[0].mxu0
      %v2466 = vadd.f32 0.0, %v2465
      %v2467 = vpop.f32.mrb[0].mxu0
      %v2468 = vpop.f32.mrb[0].mxu0
      %v2469 = vadd.f32 0.0, %v2468
      %v2470 = vpop.f32.mrb[0].mxu0
      %2471 = vmatprep.mubr.bf16.mxu0 0
      %2472 = vmatmul.mubr.bf16.gmra.mrb[0].mxu0 %v2383
      %v2473 = vpop.f32.mrb[0].mxu0
      %v2474 = vadd.f32 0.0, %v2473
      %v2475 = vpop.f32.mrb[0].mxu0
      %v2476 = vpop.f32.mrb[0].mxu0
      %v2477 = vadd.f32 0.0, %v2476
      %v2478 = vpop.f32.mrb[0].mxu0
      %2479 = vmatprep.mubr.bf16.mxu0 0
      %2480 = vmatmul.mubr.bf16.gmra.mrb[0].mxu0 %v2386
      %v2481 = vpop.f32.mrb[0].mxu0
      %v2482 = vadd.f32 0.0, %v2481
      %v2483 = vpop.f32.mrb[0].mxu0
      %v2484 = vpop.f32.mrb[0].mxu0
      %v2485 = vadd.f32 0.0, %v2484
      %v2486 = vpop.f32.mrb[0].mxu0
      %2487 = vdwg.mxu0
      %v2488 = vadd.f32 %v2317, %v2426
      %v2489 = vadd.f32 %v2318, %v2429
      %v2490 = vadd.f32 %v2319, %v2434
      %v2491 = vadd.f32 %v2320, %v2437
      %v2492 = vadd.f32 %v2321, %v2442
      %v2493 = vadd.f32 %v2322, %v2445
      %v2494 = vadd.f32 %v2323, %v2450
      %v2495 = vadd.f32 %v2324, %v2453
      %v2496 = vadd.f32 %v2325, %v2458
      %v2497 = vadd.f32 %v2326, %v2461
      %v2498 = vadd.f32 %v2327, %v2466
      %v2499 = vadd.f32 %v2328, %v2469
      %v2500 = vadd.f32 %v2329, %v2474
      %v2501 = vadd.f32 %v2330, %v2477
      %v2502 = vadd.f32 %v2331, %v2482
      %v2503 = vadd.f32 %v2332, %v2485
      %v2504 = vld [vmem:[%s247] sm:$0xff]
      %v2505 = vld [vmem:[%s247 + $0x8] sm:$0xff]
      %v2506 = vld [vmem:[%s247 + $0x10] sm:$0xff]
      %v2507 = vld [vmem:[%s247 + $0x18] sm:$0xff]
      %v2508 = vld [vmem:[%s247 + $0x20] sm:$0xff]
      %v2509 = vld [vmem:[%s247 + $0x28] sm:$0xff]
      %v2510 = vld [vmem:[%s247 + $0x30] sm:$0xff]
      %v2511 = vld [vmem:[%s247 + $0x38] sm:$0xff]
      %v2512 = vld [vmem:[%s247 + $0x40] sm:$0xff]
      %v2513 = vld [vmem:[%s247 + $0x48] sm:$0xff]
      %v2514 = vld [vmem:[%s247 + $0x50] sm:$0xff]
      %v2515 = vld [vmem:[%s247 + $0x58] sm:$0xff]
      %v2516 = vld [vmem:[%s247 + $0x60] sm:$0xff]
      %v2517 = vld [vmem:[%s247 + $0x68] sm:$0xff]
      %v2518 = vld [vmem:[%s247 + $0x70] sm:$0xff]
      %v2519 = vld [vmem:[%s247 + $0x78] sm:$0xff]
      %v2520 = vadd.f32 %v2504, %v2488
      %v2521 = vadd.f32 %v2505, %v2489
      %v2522 = vadd.f32 %v2506, %v2490
      %v2523 = vadd.f32 %v2507, %v2491
      %v2524 = vadd.f32 %v2508, %v2492
      %v2525 = vadd.f32 %v2509, %v2493
      %v2526 = vadd.f32 %v2510, %v2494
      %v2527 = vadd.f32 %v2511, %v2495
      %v2528 = vadd.f32 %v2512, %v2496
      %v2529 = vadd.f32 %v2513, %v2497
      %v2530 = vadd.f32 %v2514, %v2498
      %v2531 = vadd.f32 %v2515, %v2499
      %v2532 = vadd.f32 %v2516, %v2500
      %v2533 = vadd.f32 %v2517, %v2501
      %v2534 = vadd.f32 %v2518, %v2502
      %v2535 = vadd.f32 %v2519, %v2503
      %v2536 = vmax.f32 %v2520, 0.0
      %v2537 = vmax.f32 %v2521, 0.0
      %v2538 = vmax.f32 %v2522, 0.0
      %v2539 = vmax.f32 %v2523, 0.0
      %v2540 = vmax.f32 %v2524, 0.0
      %v2541 = vmax.f32 %v2525, 0.0
      %v2542 = vmax.f32 %v2526, 0.0
      %v2543 = vmax.f32 %v2527, 0.0
      %v2544 = vmax.f32 %v2528, 0.0
      %v2545 = vmax.f32 %v2529, 0.0
      %v2546 = vmax.f32 %v2530, 0.0
      %v2547 = vmax.f32 %v2531, 0.0
      %v2548 = vmax.f32 %v2532, 0.0
      %v2549 = vmax.f32 %v2533, 0.0
      %v2550 = vmax.f32 %v2534, 0.0
      %v2551 = vmax.f32 %v2535, 0.0
      %2552 = vst.msk [vmem:[%s253] sm:$0xff] %vm292, %v2536
      %2553 = vst.msk [vmem:[%s253 + $0x8] sm:$0xff] %vm292, %v2537
      %2554 = vst.msk [vmem:[%s253 + $0x10] sm:$0xff] %vm292, %v2538
      %2555 = vst.msk [vmem:[%s253 + $0x18] sm:$0xff] %vm292, %v2539
      %2556 = vst.msk [vmem:[%s253 + $0x20] sm:$0xff] %vm292, %v2540
      %2557 = vst.msk [vmem:[%s253 + $0x28] sm:$0xff] %vm292, %v2541
      %2558 = vst.msk [vmem:[%s253 + $0x30] sm:$0xff] %vm292, %v2542
      %2559 = vst.msk [vmem:[%s253 + $0x38] sm:$0xff] %vm292, %v2543
      %2560 = vst.msk [vmem:[%s253 + $0x40] sm:$0xff] %vm292, %v2544
      %2561 = vst.msk [vmem:[%s253 + $0x48] sm:$0xff] %vm292, %v2545
      %2562 = vst.msk [vmem:[%s253 + $0x50] sm:$0xff] %vm292, %v2546
      %2563 = vst.msk [vmem:[%s253 + $0x58] sm:$0xff] %vm292, %v2547
      %2564 = vst.msk [vmem:[%s253 + $0x60] sm:$0xff] %vm292, %v2548
      %2565 = vst.msk [vmem:[%s253 + $0x68] sm:$0xff] %vm292, %v2549
      %2566 = vst.msk [vmem:[%s253 + $0x70] sm:$0xff] %vm292, %v2550
      %2567 = vst.msk [vmem:[%s253 + $0x78] sm:$0xff] %vm292, %v2551
      %s2568 = smul.u32 16, %s17
      %p2569 = scmp.lt.s32.totalorder %s2568, 31
      %s2570 = scalar_select %p2569, %s2568, 31
      %s2571 = smul.addr %s2570, 8
      %s2572 = scalar_lea.vmem %s6, %s2571
      // Predicated region
      $region45: #{tpu_custom_call.1} parent=43 // pred_check
        %p2573 = pneg %p166
      $region46: #{tpu_custom_call.1} parent=43 // pred_check_branch
        %2575 = sbr.rel (%p2573) target = $region48
      $region47: #{tpu_custom_call.1} parent=43 // pred_region
        %s2576 = smul.u32 16, %s17
      $region48: #{tpu_custom_call.1} parent=43 // pred_fallthru
        _
    $region44: #{tpu_custom_call.1} parent=5 // pred_fallthru
      _
    %p2577 = scmp.le.s32.totalorder 2, %s12
    // Predicated region
    $region49: #{tpu_custom_call.1} parent=5 // pred_check
      %p2578 = pneg %p2577
    $region50: #{tpu_custom_call.1} parent=5 // pred_check_branch
      %2580 = sbr.rel (%p2578) target = $region52
    $region51: #{tpu_custom_call.1} parent=5 // pred_region
      %s2581 = ssub.s32 %s12, 2
      // Predicated region
      $region53: #{tpu_custom_call.1} parent=51 // pred_check
        %p2582 = pneg %p172
      $region54: #{tpu_custom_call.1} parent=51 // pred_check_branch
        %2584 = sbr.rel (%p2582) target = $region56
      $region55: #{tpu_custom_call.1} parent=51 // pred_region
        %s2585 = smul.u32 16, %s18
        %p2586 = scmp.lt.s32.totalorder %s2585, 31
        %s2587 = scalar_select %p2586, %s2585, 31
        %s2588 = smul.addr %s2587, 8
        %s2589 = scalar_lea.vmem %s6, %s2588
      $region56: #{tpu_custom_call.1} parent=51 // pred_fallthru
        _
    $region52: #{tpu_custom_call.1} parent=5 // pred_fallthru
      _
  $region6: #{tpu_custom_call.1} parent=0 // loop_footer
    %s16 = sadd.s32 1, %s12
  $region7: #{tpu_custom_call.1} parent=0 // loop_footer_branch
    %11 = sbr.rel target = $region3
  $region8: #{tpu_custom_call.1} parent=0 // loop_exit
    _

</llo_original>
